<compile_context>
chip_gen: v7x
topology: tpu7x:2x2x1
jax: 0.10.0
libtpu: 0.0.40
codegen_flags: <defaults>
</compile_context>

<pallas_src>
import math
import functools

import jax
import jax.numpy as jnp
from jax.experimental import pallas as pl
from jax.experimental.pallas import tpu as pltpu


# ----------------------------- in-kernel helpers ----------------------------

def _erf(x):
    # Abramowitz & Stegun 7.1.26; |error| <= 1.5e-7 -> float32-exact in practice.
    a1, a2, a3, a4, a5 = 0.254829592, -0.284496736, 1.421413741, -1.453152027, 1.061405429
    p = 0.3275911
    ax = jnp.abs(x)
    t = 1.0 / (1.0 + p * ax)
    poly = ((((a5 * t + a4) * t + a3) * t + a2) * t + a1) * t
    y = 1.0 - poly * jnp.exp(-ax * ax)
    return jnp.where(x >= 0, y, -y)


def _gelu_exact(x):
    # matches torch.nn.GELU() (erf formulation), f32 math
    return 0.5 * x * (1.0 + _erf(x * (1.0 / math.sqrt(2.0))))


def _layernorm(x, g, b, eps=1e-5):
    mu = jnp.mean(x, axis=-1, keepdims=True)
    var = jnp.mean(jnp.square(x - mu), axis=-1, keepdims=True)
    return (x - mu) * jax.lax.rsqrt(var + eps) * g + b


def _bf16(x):
    return x.astype(jnp.bfloat16)


# ----------------------------- Pallas kernels ------------------------------

def _layers_kernel(x_ref, mask_ref,
                   ln1g_ref, ln1b_ref,
                   wqkv_ref, bqkv_ref,
                   wfc_ref, bfc_ref,
                   ln2g_ref, ln2b_ref,
                   w1_ref, b1_ref, w2_ref, b2_ref,
                   o_ref, *, num_heads):
    """Whole decoder stack.  grid=(B, L); batch "parallel", layers "arbitrary".

    x_ref:    (1, S, E)  f32   (only consumed at l == 0)
    mask_ref: (1, 1, S)  f32   additive key-padding mask
    wqkv_ref: (1, E, 3*H*E)    bf16  [Wq^T | Wk^T | Wv^T] (columns h*E:(h+1)*E = head h)
    wfc_ref:  (1, H*E, E)      bf16  output projection (merged heads -> E)
    w1_ref:   (1, E, 4E)  bf16; w2_ref: (1, 4E, E) bf16
    o_ref:    (1, S, E)  f32   carried activation (same block for every l)
    """
    H = num_heads
    l = pl.program_id(1)

    @pl.when(l == 0)
    def _():
        o_ref[...] = x_ref[...]           # seed the resident activation

    x = o_ref[0]                          # (S, E) f32, carried across layers
    mask = mask_ref[0]                    # (1, S)
    S, E = x.shape
    scale = 1.0 / math.sqrt(E)            # reference: head_dim == emb_dim

    # ---- x = x + Attention(LN1(x), mask) ----
    ln1 = _layernorm(x, ln1g_ref[0], ln1b_ref[0])
    qkv = jnp.dot(_bf16(ln1), wqkv_ref[0],
                  preferred_element_type=jnp.float32) + bqkv_ref[0]   # (S, 3*H*E)

    ctxs = []
    for h in range(H):                    # tiny H, unrolled; projections already fused
        q = qkv[:, h * E:(h + 1) * E]
        k = qkv[:, (H + h) * E:(H + h + 1) * E]
        v = qkv[:, (2 * H + h) * E:(2 * H + h + 1) * E]
        # scores = (q / sqrt(D)) @ k^T  (contract last dims of both -> no transpose)
        s = jax.lax.dot_general(_bf16(q * scale), _bf16(k),
                                (((1,), (1,)), ((), ())),
                                preferred_element_type=jnp.float32)   # (S, S)
        s = s + mask
        s = s - jnp.max(s, axis=-1, keepdims=True)
        e = jnp.exp(s)
        p = e / jnp.sum(e, axis=-1, keepdims=True)                    # exact softmax
        ctxs.append(jnp.dot(_bf16(p), _bf16(v),
                            preferred_element_type=jnp.float32))      # (S, E)
    ctx = jnp.concatenate(ctxs, axis=-1)                              # (S, H*E)

    attn = jnp.dot(_bf16(ctx), wfc_ref[0],
                   preferred_element_type=jnp.float32) + bfc_ref[0]   # one fused out-proj
    x = x + attn                                                      # residual 1

    # ---- x = x + FFN(LN2(x)) ----
    ln2 = _layernorm(x, ln2g_ref[0], ln2b_ref[0])
    hid = jnp.dot(_bf16(ln2), w1_ref[0],
                  preferred_element_type=jnp.float32) + b1_ref[0]
    hid = _gelu_exact(hid)
    ffn = jnp.dot(_bf16(hid), w2_ref[0],
                  preferred_element_type=jnp.float32) + b2_ref[0]

    o_ref[0] = x + ffn                                                # residual 2


def _final_ln_head_kernel(x_ref, g_ref, b_ref, w_ref, o_ref):
    # logits_tile = LayerNorm(x_tile) @ W_head_tile   (head has no bias)
    ln = _layernorm(x_ref[...], g_ref[...], b_ref[...])
    o_ref[...] = jnp.dot(_bf16(ln), w_ref[...], preferred_element_type=jnp.float32)


# ----------------------------- kernel wrappers ------------------------------

def gpt2_layers(x, mask, layers, *, num_heads, num_layers):
    """x: (B, S, E) f32; mask: (B, 1, S) additive; layers: dict of L-stacked weights."""
    B, S, E = x.shape
    H, L = num_heads, num_layers
    kern = functools.partial(_layers_kernel, num_heads=H)
    act_map = lambda b, l: (b, 0, 0)      # activation / mask blocks (batch-indexed)
    w_map = lambda b, l: (l, 0, 0)        # weight blocks (layer-indexed -> prefetched)
    return pl.pallas_call(
        kern,
        out_shape=jax.ShapeDtypeStruct((B, S, E), jnp.float32),
        grid=(B, L),
        in_specs=[
            pl.BlockSpec((1, S, E), act_map),          # x
            pl.BlockSpec((1, 1, S), act_map),          # mask
            pl.BlockSpec((1, 1, E), w_map),            # ln1_g
            pl.BlockSpec((1, 1, E), w_map),            # ln1_b
            pl.BlockSpec((1, E, 3 * H * E), w_map),    # wqkv (bf16)
            pl.BlockSpec((1, 1, 3 * H * E), w_map),    # bqkv
            pl.BlockSpec((1, H * E, E), w_map),        # wfc  (bf16)
            pl.BlockSpec((1, 1, E), w_map),            # bfc
            pl.BlockSpec((1, 1, E), w_map),            # ln2_g
            pl.BlockSpec((1, 1, E), w_map),            # ln2_b
            pl.BlockSpec((1, E, 4 * E), w_map),        # w1 (bf16)
            pl.BlockSpec((1, 1, 4 * E), w_map),        # b1
            pl.BlockSpec((1, 4 * E, E), w_map),        # w2 (bf16)
            pl.BlockSpec((1, 1, E), w_map),            # b2
        ],
        out_specs=pl.BlockSpec((1, S, E), act_map),    # same block across l -> carried
        compiler_params=pltpu.CompilerParams(
            dimension_semantics=("parallel", "arbitrary"),
            vmem_limit_bytes=32 * 1024 * 1024),
    )(x, mask,
      layers["ln1_g"], layers["ln1_b"],
      layers["wqkv"], layers["bqkv"],
      layers["wfc"], layers["bfc"],
      layers["ln2_g"], layers["ln2_b"],
      layers["w1"], layers["b1"], layers["w2"], layers["b2"])


def final_ln_head(x2d, g, b, w_head, *, tm=256, tn=1024):
    """x2d: (M, E) f32; w_head pre-transposed (E, V) bf16; returns (M, V) f32 logits."""
    M, E = x2d.shape
    V = w_head.shape[1]
    TM = M if (M <= tm or M % tm != 0) else tm          # full or 256-row tiles
    TN = V if (V <= tn or V % tn != 0) else tn          # full or 1024-lane tiles
    grid = (M // TM, V // TN)
    return pl.pallas_call(
        _final_ln_head_kernel,
        out_shape=jax.ShapeDtypeStruct((M, V), jnp.float32),
        grid=grid,
        in_specs=[pl.BlockSpec((TM, E), lambda i, j: (i, 0)),
                  pl.BlockSpec((1, E), lambda i, j: (0, 0)),
                  pl.BlockSpec((1, E), lambda i, j: (0, 0)),
                  pl.BlockSpec((E, TN), lambda i, j: (0, j))],
        out_specs=pl.BlockSpec((TM, TN), lambda i, j: (i, j)),
        compiler_params=pltpu.CompilerParams(
            dimension_semantics=("parallel", "parallel"),
            vmem_limit_bytes=32 * 1024 * 1024),
    )(x2d, g.reshape(1, E), b.reshape(1, E), w_head)


# ----------------------------- model assembly ------------------------------

def init_params(key, *, vocab_size, emb_dim, max_seq_len, num_heads, num_layers):
    """Weights generated directly in kernel-friendly layouts.

    Matmul weights stored bf16 (MXU operands); LN params / biases / embeddings f32.
    Per-layer weights are stacked on a leading L axis for the fused-stack kernel.
    """
    E, H, L = emb_dim, num_heads, num_layers

    def normal(k, shape, std=0.02, dtype=jnp.float32):
        return (std * jax.random.normal(k, shape, dtype=jnp.float32)).astype(dtype)

    keys = jax.random.split(key, 7)
    params = {
        "token_embs": normal(keys[0], (vocab_size, E)),
        "pos_embs": normal(keys[1], (max_seq_len, E)),
        "ln_f_g": jnp.ones((E,), jnp.float32),
        "ln_f_b": jnp.zeros((E,), jnp.float32),
        # lm head (fc, bias=False), stored as W^T = (E, V), bf16
        "lm_head_w": normal(keys[2], (E, vocab_size), dtype=jnp.bfloat16),
        "layers": {
            "ln1_g": jnp.ones((L, 1, E), jnp.float32),
            "ln1_b": jnp.zeros((L, 1, E), jnp.float32),
            # fused Q/K/V projection: columns [Wq^T | Wk^T | Wv^T], head h = cols h*E:(h+1)*E
            "wqkv": normal(keys[3], (L, E, 3 * H * E), dtype=jnp.bfloat16),
            "bqkv": jnp.zeros((L, 1, 3 * H * E), jnp.float32),
            # output projection (merged heads H*E -> E), pre-transposed
            "wfc": normal(keys[4], (L, H * E, E), dtype=jnp.bfloat16),
            "bfc": jnp.zeros((L, 1, E), jnp.float32),
            "ln2_g": jnp.ones((L, 1, E), jnp.float32),
            "ln2_b": jnp.zeros((L, 1, E), jnp.float32),
            # FFN weights pre-transposed to (K, N)
            "w1": normal(keys[5], (L, E, 4 * E), dtype=jnp.bfloat16),
            "b1": jnp.zeros((L, 1, 4 * E), jnp.float32),
            "w2": normal(keys[6], (L, 4 * E, E), dtype=jnp.bfloat16),
            "b2": jnp.zeros((L, 1, E), jnp.float32),
        },
    }
    return params


def gpt2_forward(params, input_ids, attention_mask, *, num_heads, num_layers):
    B, S = input_ids.shape
    E = params["token_embs"].shape[1]

    # embeddings (gathers are plain-JAX glue), dropout = identity (eval)
    tok = jnp.take(params["token_embs"], input_ids, axis=0)      # (B, S, E)
    pos = params["pos_embs"][:S][None, :, :]                     # (1, S, E)
    h = tok + pos

    # additive padding mask: (B, 1, S) = (1 - m) * -10000
    mask = (1.0 - attention_mask.reshape(B, 1, S).astype(jnp.float32)) * -10000.0

    # one fused pallas_call for the whole decoder stack
    h = gpt2_layers(h, mask, params["layers"],
                    num_heads=num_heads, num_layers=num_layers)

    # fused, grid-tiled final LayerNorm + vocab projection (no bias)
    logits = final_ln_head(h.reshape(B * S, E),
                           params["ln_f_g"], params["ln_f_b"],
                           params["lm_head_w"])
    return logits.reshape(B, S, -1)


# --------------------------------- main -------------------------------------

if __name__ == "__main__":
    vocab_size, emb_dim, max_seq_len = 64, 32, 16
    num_heads, num_layers = 2, 2
    B, S = 2, 8

    key = jax.random.PRNGKey(0)
    pkey, ikey = jax.random.split(key)

    params = init_params(pkey, vocab_size=vocab_size, emb_dim=emb_dim,
                         max_seq_len=max_seq_len, num_heads=num_heads,
                         num_layers=num_layers)

    input_ids = jax.random.randint(ikey, (B, S), 0, vocab_size, dtype=jnp.int32)
    attention_mask = jnp.ones((B, S), jnp.float32).at[1, 6:].set(0.0)  # pad last 2 of batch 1

    fwd = jax.jit(functools.partial(gpt2_forward, num_heads=num_heads,
                                    num_layers=num_layers))
    logits = fwd(params, input_ids, attention_mask)
    jax.block_until_ready(logits)

    assert logits.shape == (B, S, vocab_size), logits.shape
    assert bool(jnp.all(jnp.isfinite(logits)))
    print("KERNEL_OK")
</pallas_src>

<mosaic_0001>
module attributes {stable_mosaic.version = 11 : i64} {
  func.func @_final_ln_head_kernel(%arg0: i32, %arg1: i32, %arg2: memref<16x32xf32, #tpu.memory_space<vmem>>, %arg3: memref<1x32xf32, #tpu.memory_space<vmem>>, %arg4: memref<1x32xf32, #tpu.memory_space<vmem>>, %arg5: memref<32x64xbf16, #tpu.memory_space<vmem>>, %arg6: memref<16x64xf32, #tpu.memory_space<vmem>>) attributes {dimension_semantics = [#tpu.dimension_semantics<parallel>, #tpu.dimension_semantics<parallel>], iteration_bounds = array<i64: 1, 1>, scalar_prefetch = 0 : i64, scratch_operands = 0 : i64, tpu.core_type = #tpu.core_type<tc>, window_params = [{transform_indices = @transform_0, window_bounds = array<i64: 16, 32>}, {pipeline_mode = #tpu.pipeline_mode<synchronous>, transform_indices = @transform_1, window_bounds = array<i64: 1, 32>}, {pipeline_mode = #tpu.pipeline_mode<synchronous>, transform_indices = @transform_2, window_bounds = array<i64: 1, 32>}, {transform_indices = @transform_3, window_bounds = array<i64: 32, 64>}, {transform_indices = @transform_4, window_bounds = array<i64: 16, 64>}]} {
    %c0 = arith.constant 0 : index
    %c0_0 = arith.constant 0 : index
    %0 = vector.load %arg2[%c0, %c0_0] : memref<16x32xf32, #tpu.memory_space<vmem>>, vector<16x32xf32>
    %c0_1 = arith.constant 0 : index
    %c0_2 = arith.constant 0 : index
    %1 = vector.load %arg3[%c0_1, %c0_2] : memref<1x32xf32, #tpu.memory_space<vmem>>, vector<1x32xf32>
    %c0_3 = arith.constant 0 : index
    %c0_4 = arith.constant 0 : index
    %2 = vector.load %arg4[%c0_3, %c0_4] : memref<1x32xf32, #tpu.memory_space<vmem>>, vector<1x32xf32>
    %cst = arith.constant dense<0.000000e+00> : vector<16xf32>
    %3 = vector.multi_reduction <add>, %0, %cst [1] : vector<16x32xf32> to vector<16xf32>
    %4 = vector.shape_cast %3 : vector<16xf32> to vector<16x1xf32>
    %cst_5 = arith.constant 3.200000e+01 : f32
    %5 = vector.broadcast %cst_5 : f32 to vector<16x1xf32>
    %6 = arith.divf %4, %5 : vector<16x1xf32>
    %7 = vector.broadcast %6 : vector<16x1xf32> to vector<16x32xf32>
    %8 = arith.subf %0, %7 : vector<16x32xf32>
    %9 = arith.mulf %8, %8 : vector<16x32xf32>
    %cst_6 = arith.constant dense<0.000000e+00> : vector<16xf32>
    %10 = vector.multi_reduction <add>, %9, %cst_6 [1] : vector<16x32xf32> to vector<16xf32>
    %11 = vector.shape_cast %10 : vector<16xf32> to vector<16x1xf32>
    %cst_7 = arith.constant 3.200000e+01 : f32
    %12 = vector.broadcast %cst_7 : f32 to vector<16x1xf32>
    %13 = arith.divf %11, %12 : vector<16x1xf32>
    %14 = vector.broadcast %6 : vector<16x1xf32> to vector<16x32xf32>
    %15 = arith.subf %0, %14 : vector<16x32xf32>
    %cst_8 = arith.constant 9.99999974E-6 : f32
    %16 = vector.broadcast %cst_8 : f32 to vector<16x1xf32>
    %17 = arith.addf %13, %16 : vector<16x1xf32>
    %18 = math.rsqrt %17 : vector<16x1xf32>
    %19 = vector.broadcast %18 : vector<16x1xf32> to vector<16x32xf32>
    %20 = arith.mulf %15, %19 : vector<16x32xf32>
    %21 = vector.broadcast %1 : vector<1x32xf32> to vector<16x32xf32>
    %22 = arith.mulf %20, %21 : vector<16x32xf32>
    %23 = vector.broadcast %2 : vector<1x32xf32> to vector<16x32xf32>
    %24 = arith.addf %22, %23 : vector<16x32xf32>
    %25 = arith.truncf %24 : vector<16x32xf32> to vector<16x32xbf16>
    %c0_9 = arith.constant 0 : index
    %c0_10 = arith.constant 0 : index
    %26 = vector.load %arg5[%c0_9, %c0_10] : memref<32x64xbf16, #tpu.memory_space<vmem>>, vector<32x64xbf16>
    %cst_11 = arith.constant dense<0.000000e+00> : vector<16x64xf32>
    %27 = tpu.matmul %25, %26, %cst_11 {dimension_numbers = #tpu.dot_dimension_numbers<[1], [0], [0], [1], [0, 0, 1, 1], [], []>} : vector<16x32xbf16>, vector<32x64xbf16>, vector<16x64xf32> -> vector<16x64xf32>
    %c0_12 = arith.constant 0 : index
    %c0_13 = arith.constant 0 : index
    %28 = vector.load %arg6[%c0_12, %c0_13] : memref<16x64xf32, #tpu.memory_space<vmem>>, vector<16x64xf32>
    tpu.vector_store %arg6[%c0_12, %c0_13], %27 {strides = array<i32>} : memref<16x64xf32, #tpu.memory_space<vmem>>, vector<16x64xf32>,
    return
  }
  func.func @transform_0(%arg0: i32, %arg1: i32) -> (i32, i32) {
    %c0_i32 = arith.constant 0 : i32
    %c0_i32_0 = arith.constant 0 : i32
    return %arg0, %c0_i32 : i32, i32
  }
  func.func @transform_1(%arg0: i32, %arg1: i32) -> (i32, i32) {
    %c0_i32 = arith.constant 0 : i32
    %c0_i32_0 = arith.constant 0 : i32
    %c0_i32_1 = arith.constant 0 : i32
    return %c0_i32, %c0_i32_0 : i32, i32
  }
  func.func @transform_2(%arg0: i32, %arg1: i32) -> (i32, i32) {
    %c0_i32 = arith.constant 0 : i32
    %c0_i32_0 = arith.constant 0 : i32
    %c0_i32_1 = arith.constant 0 : i32
    return %c0_i32, %c0_i32_0 : i32, i32
  }
  func.func @transform_3(%arg0: i32, %arg1: i32) -> (i32, i32) {
    %c0_i32 = arith.constant 0 : i32
    %c0_i32_0 = arith.constant 0 : i32
    return %c0_i32, %arg1 : i32, i32
  }
  func.func @transform_4(%arg0: i32, %arg1: i32) -> (i32, i32) {
    %c0_i32 = arith.constant 0 : i32
    return %arg0, %arg1 : i32, i32
  }
}

module attributes {stable_mosaic.version = 11 : i64} {
  func.func @_layers_kernel(%arg0: i32, %arg1: i32, %arg2: memref<1x8x32xf32, #tpu.memory_space<vmem>>, %arg3: memref<1x1x8xf32, #tpu.memory_space<vmem>>, %arg4: memref<1x1x32xf32, #tpu.memory_space<vmem>>, %arg5: memref<1x1x32xf32, #tpu.memory_space<vmem>>, %arg6: memref<1x32x192xbf16, #tpu.memory_space<vmem>>, %arg7: memref<1x1x192xf32, #tpu.memory_space<vmem>>, %arg8: memref<1x64x32xbf16, #tpu.memory_space<vmem>>, %arg9: memref<1x1x32xf32, #tpu.memory_space<vmem>>, %arg10: memref<1x1x32xf32, #tpu.memory_space<vmem>>, %arg11: memref<1x1x32xf32, #tpu.memory_space<vmem>>, %arg12: memref<1x32x128xbf16, #tpu.memory_space<vmem>>, %arg13: memref<1x1x128xf32, #tpu.memory_space<vmem>>, %arg14: memref<1x128x32xbf16, #tpu.memory_space<vmem>>, %arg15: memref<1x1x32xf32, #tpu.memory_space<vmem>>, %arg16: memref<1x8x32xf32, #tpu.memory_space<vmem>>) attributes {dimension_semantics = [#tpu.dimension_semantics<parallel>, #tpu.dimension_semantics<arbitrary>], iteration_bounds = array<i64: 2, 2>, scalar_prefetch = 0 : i64, scratch_operands = 0 : i64, tpu.core_type = #tpu.core_type<tc>, window_params = [{transform_indices = @transform_0, window_bounds = array<i64: 1, 8, 32>}, {transform_indices = @transform_1, window_bounds = array<i64: 1, 1, 8>}, {transform_indices = @transform_2, window_bounds = array<i64: 1, 1, 32>}, {transform_indices = @transform_3, window_bounds = array<i64: 1, 1, 32>}, {transform_indices = @transform_4, window_bounds = array<i64: 1, 32, 192>}, {transform_indices = @transform_5, window_bounds = array<i64: 1, 1, 192>}, {transform_indices = @transform_6, window_bounds = array<i64: 1, 64, 32>}, {transform_indices = @transform_7, window_bounds = array<i64: 1, 1, 32>}, {transform_indices = @transform_8, window_bounds = array<i64: 1, 1, 32>}, {transform_indices = @transform_9, window_bounds = array<i64: 1, 1, 32>}, {transform_indices = @transform_10, window_bounds = array<i64: 1, 32, 128>}, {transform_indices = @transform_11, window_bounds = array<i64: 1, 1, 128>}, {transform_indices = @transform_12, window_bounds = array<i64: 1, 128, 32>}, {transform_indices = @transform_13, window_bounds = array<i64: 1, 1, 32>}, {transform_indices = @transform_14, window_bounds = array<i64: 1, 8, 32>}]} {
    %c0_i32 = arith.constant 0 : i32
    %0 = arith.cmpi eq, %arg1, %c0_i32 : i32
    %1 = arith.extui %0 : i1 to i32
    %c0_i32_0 = arith.constant 0 : i32
    %2 = arith.cmpi ne, %1, %c0_i32_0 : i32
    scf.if %2 {
      %c0_83 = arith.constant 0 : index
      %c0_84 = arith.constant 0 : index
      %c0_85 = arith.constant 0 : index
      %181 = vector.load %arg2[%c0_83, %c0_84, %c0_85] : memref<1x8x32xf32, #tpu.memory_space<vmem>>, vector<1x8x32xf32>
      %c0_86 = arith.constant 0 : index
      %c0_87 = arith.constant 0 : index
      %c0_88 = arith.constant 0 : index
      %182 = vector.load %arg16[%c0_86, %c0_87, %c0_88] : memref<1x8x32xf32, #tpu.memory_space<vmem>>, vector<1x8x32xf32>
      tpu.vector_store %arg16[%c0_86, %c0_87, %c0_88], %181 {strides = array<i32>} : memref<1x8x32xf32, #tpu.memory_space<vmem>>, vector<1x8x32xf32>,
    } else {
    }
    %c0 = arith.constant 0 : index
    %c0_1 = arith.constant 0 : index
    %c0_2 = arith.constant 0 : index
    %3 = vector.load %arg16[%c0, %c0_1, %c0_2] : memref<1x8x32xf32, #tpu.memory_space<vmem>>, vector<1x8x32xf32>
    %4 = vector.shape_cast %3 : vector<1x8x32xf32> to vector<8x32xf32>
    %c0_3 = arith.constant 0 : index
    %c0_4 = arith.constant 0 : index
    %c0_5 = arith.constant 0 : index
    %5 = vector.load %arg3[%c0_3, %c0_4, %c0_5] : memref<1x1x8xf32, #tpu.memory_space<vmem>>, vector<1x1x8xf32>
    %6 = vector.shape_cast %5 : vector<1x1x8xf32> to vector<1x8xf32>
    %c0_6 = arith.constant 0 : index
    %c0_7 = arith.constant 0 : index
    %c0_8 = arith.constant 0 : index
    %7 = vector.load %arg4[%c0_6, %c0_7, %c0_8] : memref<1x1x32xf32, #tpu.memory_space<vmem>>, vector<1x1x32xf32>
    %8 = vector.shape_cast %7 : vector<1x1x32xf32> to vector<1x32xf32>
    %c0_9 = arith.constant 0 : index
    %c0_10 = arith.constant 0 : index
    %c0_11 = arith.constant 0 : index
    %9 = vector.load %arg5[%c0_9, %c0_10, %c0_11] : memref<1x1x32xf32, #tpu.memory_space<vmem>>, vector<1x1x32xf32>
    %10 = vector.shape_cast %9 : vector<1x1x32xf32> to vector<1x32xf32>
    %cst = arith.constant dense<0.000000e+00> : vector<8xf32>
    %11 = vector.multi_reduction <add>, %4, %cst [1] : vector<8x32xf32> to vector<8xf32>
    %12 = vector.shape_cast %11 : vector<8xf32> to vector<8x1xf32>
    %cst_12 = arith.constant 3.200000e+01 : f32
    %13 = vector.broadcast %cst_12 : f32 to vector<8x1xf32>
    %14 = arith.divf %12, %13 : vector<8x1xf32>
    %15 = vector.broadcast %14 : vector<8x1xf32> to vector<8x32xf32>
    %16 = arith.subf %4, %15 : vector<8x32xf32>
    %17 = arith.mulf %16, %16 : vector<8x32xf32>
    %cst_13 = arith.constant dense<0.000000e+00> : vector<8xf32>
    %18 = vector.multi_reduction <add>, %17, %cst_13 [1] : vector<8x32xf32> to vector<8xf32>
    %19 = vector.shape_cast %18 : vector<8xf32> to vector<8x1xf32>
    %cst_14 = arith.constant 3.200000e+01 : f32
    %20 = vector.broadcast %cst_14 : f32 to vector<8x1xf32>
    %21 = arith.divf %19, %20 : vector<8x1xf32>
    %22 = vector.broadcast %14 : vector<8x1xf32> to vector<8x32xf32>
    %23 = arith.subf %4, %22 : vector<8x32xf32>
    %cst_15 = arith.constant 9.99999974E-6 : f32
    %24 = vector.broadcast %cst_15 : f32 to vector<8x1xf32>
    %25 = arith.addf %21, %24 : vector<8x1xf32>
    %26 = math.rsqrt %25 : vector<8x1xf32>
    %27 = vector.broadcast %26 : vector<8x1xf32> to vector<8x32xf32>
    %28 = arith.mulf %23, %27 : vector<8x32xf32>
    %29 = vector.broadcast %8 : vector<1x32xf32> to vector<8x32xf32>
    %30 = arith.mulf %28, %29 : vector<8x32xf32>
    %31 = vector.broadcast %10 : vector<1x32xf32> to vector<8x32xf32>
    %32 = arith.addf %30, %31 : vector<8x32xf32>
    %33 = arith.truncf %32 : vector<8x32xf32> to vector<8x32xbf16>
    %c0_16 = arith.constant 0 : index
    %c0_17 = arith.constant 0 : index
    %c0_18 = arith.constant 0 : index
    %34 = vector.load %arg6[%c0_16, %c0_17, %c0_18] : memref<1x32x192xbf16, #tpu.memory_space<vmem>>, vector<1x32x192xbf16>
    %35 = vector.shape_cast %34 : vector<1x32x192xbf16> to vector<32x192xbf16>
    %cst_19 = arith.constant dense<0.000000e+00> : vector<8x192xf32>
    %36 = tpu.matmul %33, %35, %cst_19 {dimension_numbers = #tpu.dot_dimension_numbers<[1], [0], [0], [1], [0, 0, 1, 1], [], []>} : vector<8x32xbf16>, vector<32x192xbf16>, vector<8x192xf32> -> vector<8x192xf32>
    %c0_20 = arith.constant 0 : index
    %c0_21 = arith.constant 0 : index
    %c0_22 = arith.constant 0 : index
    %37 = vector.load %arg7[%c0_20, %c0_21, %c0_22] : memref<1x1x192xf32, #tpu.memory_space<vmem>>, vector<1x1x192xf32>
    %38 = vector.shape_cast %37 : vector<1x1x192xf32> to vector<1x192xf32>
    %39 = vector.broadcast %38 : vector<1x192xf32> to vector<8x192xf32>
    %40 = arith.addf %36, %39 : vector<8x192xf32>
    %41 = vector.extract_strided_slice %40 {offsets = [0, 0], sizes = [8, 32], strides = [1, 1]} : vector<8x192xf32> to vector<8x32xf32>
    %42 = vector.extract_strided_slice %40 {offsets = [0, 64], sizes = [8, 32], strides = [1, 1]} : vector<8x192xf32> to vector<8x32xf32>
    %43 = vector.extract_strided_slice %40 {offsets = [0, 128], sizes = [8, 32], strides = [1, 1]} : vector<8x192xf32> to vector<8x32xf32>
    %cst_23 = arith.constant 0.176776692 : f32
    %44 = vector.broadcast %cst_23 : f32 to vector<8x32xf32>
    %45 = arith.mulf %41, %44 : vector<8x32xf32>
    %46 = arith.truncf %45 : vector<8x32xf32> to vector<8x32xbf16>
    %47 = arith.truncf %42 : vector<8x32xf32> to vector<8x32xbf16>
    %cst_24 = arith.constant dense<0.000000e+00> : vector<8x8xf32>
    %48 = tpu.matmul %46, %47, %cst_24 {dimension_numbers = #tpu.dot_dimension_numbers<[1], [1], [0], [0], [0, 0, 1, 0], [], []>} : vector<8x32xbf16>, vector<8x32xbf16>, vector<8x8xf32> -> vector<8x8xf32>
    %49 = vector.broadcast %6 : vector<1x8xf32> to vector<8x8xf32>
    %50 = arith.addf %48, %49 : vector<8x8xf32>
    %cst_25 = arith.constant dense<0xFF800000> : vector<8xf32>
    %51 = vector.multi_reduction <maximumf>, %50, %cst_25 [1] : vector<8x8xf32> to vector<8xf32>
    %52 = vector.shape_cast %51 : vector<8xf32> to vector<8x1xf32>
    %53 = vector.broadcast %52 : vector<8x1xf32> to vector<8x8xf32>
    %54 = arith.subf %50, %53 : vector<8x8xf32>
    %55 = math.exp %54 : vector<8x8xf32>
    %cst_26 = arith.constant dense<0.000000e+00> : vector<8xf32>
    %56 = vector.multi_reduction <add>, %55, %cst_26 [1] : vector<8x8xf32> to vector<8xf32>
    %57 = vector.shape_cast %56 : vector<8xf32> to vector<8x1xf32>
    %58 = vector.broadcast %57 : vector<8x1xf32> to vector<8x8xf32>
    %59 = arith.divf %55, %58 : vector<8x8xf32>
    %60 = arith.truncf %59 : vector<8x8xf32> to vector<8x8xbf16>
    %61 = arith.truncf %43 : vector<8x32xf32> to vector<8x32xbf16>
    %cst_27 = arith.constant dense<0.000000e+00> : vector<8x32xf32>
    %62 = tpu.matmul %60, %61, %cst_27 {dimension_numbers = #tpu.dot_dimension_numbers<[1], [0], [0], [1], [0, 0, 1, 1], [], []>} : vector<8x8xbf16>, vector<8x32xbf16>, vector<8x32xf32> -> vector<8x32xf32>
    %63 = vector.extract_strided_slice %40 {offsets = [0, 32], sizes = [8, 32], strides = [1, 1]} : vector<8x192xf32> to vector<8x32xf32>
    %64 = vector.extract_strided_slice %40 {offsets = [0, 96], sizes = [8, 32], strides = [1, 1]} : vector<8x192xf32> to vector<8x32xf32>
    %65 = vector.extract_strided_slice %40 {offsets = [0, 160], sizes = [8, 32], strides = [1, 1]} : vector<8x192xf32> to vector<8x32xf32>
    %cst_28 = arith.constant 0.176776692 : f32
    %66 = vector.broadcast %cst_28 : f32 to vector<8x32xf32>
    %67 = arith.mulf %63, %66 : vector<8x32xf32>
    %68 = arith.truncf %67 : vector<8x32xf32> to vector<8x32xbf16>
    %69 = arith.truncf %64 : vector<8x32xf32> to vector<8x32xbf16>
    %cst_29 = arith.constant dense<0.000000e+00> : vector<8x8xf32>
    %70 = tpu.matmul %68, %69, %cst_29 {dimension_numbers = #tpu.dot_dimension_numbers<[1], [1], [0], [0], [0, 0, 1, 0], [], []>} : vector<8x32xbf16>, vector<8x32xbf16>, vector<8x8xf32> -> vector<8x8xf32>
    %71 = vector.broadcast %6 : vector<1x8xf32> to vector<8x8xf32>
    %72 = arith.addf %70, %71 : vector<8x8xf32>
    %cst_30 = arith.constant dense<0xFF800000> : vector<8xf32>
    %73 = vector.multi_reduction <maximumf>, %72, %cst_30 [1] : vector<8x8xf32> to vector<8xf32>
    %74 = vector.shape_cast %73 : vector<8xf32> to vector<8x1xf32>
    %75 = vector.broadcast %74 : vector<8x1xf32> to vector<8x8xf32>
    %76 = arith.subf %72, %75 : vector<8x8xf32>
    %77 = math.exp %76 : vector<8x8xf32>
    %cst_31 = arith.constant dense<0.000000e+00> : vector<8xf32>
    %78 = vector.multi_reduction <add>, %77, %cst_31 [1] : vector<8x8xf32> to vector<8xf32>
    %79 = vector.shape_cast %78 : vector<8xf32> to vector<8x1xf32>
    %80 = vector.broadcast %79 : vector<8x1xf32> to vector<8x8xf32>
    %81 = arith.divf %77, %80 : vector<8x8xf32>
    %82 = arith.truncf %81 : vector<8x8xf32> to vector<8x8xbf16>
    %83 = arith.truncf %65 : vector<8x32xf32> to vector<8x32xbf16>
    %cst_32 = arith.constant dense<0.000000e+00> : vector<8x32xf32>
    %84 = tpu.matmul %82, %83, %cst_32 {dimension_numbers = #tpu.dot_dimension_numbers<[1], [0], [0], [1], [0, 0, 1, 1], [], []>} : vector<8x8xbf16>, vector<8x32xbf16>, vector<8x32xf32> -> vector<8x32xf32>
    %85 = tpu.concatenate %62, %84 in 1 : vector<8x32xf32>, vector<8x32xf32> -> vector<8x64xf32>
    %86 = arith.truncf %85 : vector<8x64xf32> to vector<8x64xbf16>
    %c0_33 = arith.constant 0 : index
    %c0_34 = arith.constant 0 : index
    %c0_35 = arith.constant 0 : index
    %87 = vector.load %arg8[%c0_33, %c0_34, %c0_35] : memref<1x64x32xbf16, #tpu.memory_space<vmem>>, vector<1x64x32xbf16>
    %88 = vector.shape_cast %87 : vector<1x64x32xbf16> to vector<64x32xbf16>
    %cst_36 = arith.constant dense<0.000000e+00> : vector<8x32xf32>
    %89 = tpu.matmul %86, %88, %cst_36 {dimension_numbers = #tpu.dot_dimension_numbers<[1], [0], [0], [1], [0, 0, 1, 1], [], []>} : vector<8x64xbf16>, vector<64x32xbf16>, vector<8x32xf32> -> vector<8x32xf32>
    %c0_37 = arith.constant 0 : index
    %c0_38 = arith.constant 0 : index
    %c0_39 = arith.constant 0 : index
    %90 = vector.load %arg9[%c0_37, %c0_38, %c0_39] : memref<1x1x32xf32, #tpu.memory_space<vmem>>, vector<1x1x32xf32>
    %91 = vector.shape_cast %90 : vector<1x1x32xf32> to vector<1x32xf32>
    %92 = vector.broadcast %91 : vector<1x32xf32> to vector<8x32xf32>
    %93 = arith.addf %89, %92 : vector<8x32xf32>
    %94 = arith.addf %4, %93 : vector<8x32xf32>
    %c0_40 = arith.constant 0 : index
    %c0_41 = arith.constant 0 : index
    %c0_42 = arith.constant 0 : index
    %95 = vector.load %arg10[%c0_40, %c0_41, %c0_42] : memref<1x1x32xf32, #tpu.memory_space<vmem>>, vector<1x1x32xf32>
    %96 = vector.shape_cast %95 : vector<1x1x32xf32> to vector<1x32xf32>
    %c0_43 = arith.constant 0 : index
    %c0_44 = arith.constant 0 : index
    %c0_45 = arith.constant 0 : index
    %97 = vector.load %arg11[%c0_43, %c0_44, %c0_45] : memref<1x1x32xf32, #tpu.memory_space<vmem>>, vector<1x1x32xf32>
    %98 = vector.shape_cast %97 : vector<1x1x32xf32> to vector<1x32xf32>
    %cst_46 = arith.constant dense<0.000000e+00> : vector<8xf32>
    %99 = vector.multi_reduction <add>, %94, %cst_46 [1] : vector<8x32xf32> to vector<8xf32>
    %100 = vector.shape_cast %99 : vector<8xf32> to vector<8x1xf32>
    %cst_47 = arith.constant 3.200000e+01 : f32
    %101 = vector.broadcast %cst_47 : f32 to vector<8x1xf32>
    %102 = arith.divf %100, %101 : vector<8x1xf32>
    %103 = vector.broadcast %102 : vector<8x1xf32> to vector<8x32xf32>
    %104 = arith.subf %94, %103 : vector<8x32xf32>
    %105 = arith.mulf %104, %104 : vector<8x32xf32>
    %cst_48 = arith.constant dense<0.000000e+00> : vector<8xf32>
    %106 = vector.multi_reduction <add>, %105, %cst_48 [1] : vector<8x32xf32> to vector<8xf32>
    %107 = vector.shape_cast %106 : vector<8xf32> to vector<8x1xf32>
    %cst_49 = arith.constant 3.200000e+01 : f32
    %108 = vector.broadcast %cst_49 : f32 to vector<8x1xf32>
    %109 = arith.divf %107, %108 : vector<8x1xf32>
    %110 = vector.broadcast %102 : vector<8x1xf32> to vector<8x32xf32>
    %111 = arith.subf %94, %110 : vector<8x32xf32>
    %cst_50 = arith.constant 9.99999974E-6 : f32
    %112 = vector.broadcast %cst_50 : f32 to vector<8x1xf32>
    %113 = arith.addf %109, %112 : vector<8x1xf32>
    %114 = math.rsqrt %113 : vector<8x1xf32>
    %115 = vector.broadcast %114 : vector<8x1xf32> to vector<8x32xf32>
    %116 = arith.mulf %111, %115 : vector<8x32xf32>
    %117 = vector.broadcast %96 : vector<1x32xf32> to vector<8x32xf32>
    %118 = arith.mulf %116, %117 : vector<8x32xf32>
    %119 = vector.broadcast %98 : vector<1x32xf32> to vector<8x32xf32>
    %120 = arith.addf %118, %119 : vector<8x32xf32>
    %121 = arith.truncf %120 : vector<8x32xf32> to vector<8x32xbf16>
    %c0_51 = arith.constant 0 : index
    %c0_52 = arith.constant 0 : index
    %c0_53 = arith.constant 0 : index
    %122 = vector.load %arg12[%c0_51, %c0_52, %c0_53] : memref<1x32x128xbf16, #tpu.memory_space<vmem>>, vector<1x32x128xbf16>
    %123 = vector.shape_cast %122 : vector<1x32x128xbf16> to vector<32x128xbf16>
    %cst_54 = arith.constant dense<0.000000e+00> : vector<8x128xf32>
    %124 = tpu.matmul %121, %123, %cst_54 {dimension_numbers = #tpu.dot_dimension_numbers<[1], [0], [0], [1], [0, 0, 1, 1], [], []>} : vector<8x32xbf16>, vector<32x128xbf16>, vector<8x128xf32> -> vector<8x128xf32>
    %c0_55 = arith.constant 0 : index
    %c0_56 = arith.constant 0 : index
    %c0_57 = arith.constant 0 : index
    %125 = vector.load %arg13[%c0_55, %c0_56, %c0_57] : memref<1x1x128xf32, #tpu.memory_space<vmem>>, vector<1x1x128xf32>
    %126 = vector.shape_cast %125 : vector<1x1x128xf32> to vector<1x128xf32>
    %127 = vector.broadcast %126 : vector<1x128xf32> to vector<8x128xf32>
    %128 = arith.addf %124, %127 : vector<8x128xf32>
    %cst_58 = arith.constant 5.000000e-01 : f32
    %129 = vector.broadcast %cst_58 : f32 to vector<8x128xf32>
    %130 = arith.mulf %129, %128 : vector<8x128xf32>
    %cst_59 = arith.constant 0.707106769 : f32
    %131 = vector.broadcast %cst_59 : f32 to vector<8x128xf32>
    %132 = arith.mulf %128, %131 : vector<8x128xf32>
    %133 = math.absf %132 : vector<8x128xf32>
    %cst_60 = arith.constant 0.327591091 : f32
    %134 = vector.broadcast %cst_60 : f32 to vector<8x128xf32>
    %135 = arith.mulf %134, %133 : vector<8x128xf32>
    %cst_61 = arith.constant 1.000000e+00 : f32
    %136 = vector.broadcast %cst_61 : f32 to vector<8x128xf32>
    %137 = arith.addf %136, %135 : vector<8x128xf32>
    %cst_62 = arith.constant 1.000000e+00 : f32
    %138 = vector.broadcast %cst_62 : f32 to vector<8x128xf32>
    %139 = arith.divf %138, %137 : vector<8x128xf32>
    %cst_63 = arith.constant 1.06140542 : f32
    %140 = vector.broadcast %cst_63 : f32 to vector<8x128xf32>
    %141 = arith.mulf %140, %139 : vector<8x128xf32>
    %cst_64 = arith.constant -1.45315206 : f32
    %142 = vector.broadcast %cst_64 : f32 to vector<8x128xf32>
    %143 = arith.addf %141, %142 : vector<8x128xf32>
    %144 = arith.mulf %143, %139 : vector<8x128xf32>
    %cst_65 = arith.constant 1.42141378 : f32
    %145 = vector.broadcast %cst_65 : f32 to vector<8x128xf32>
    %146 = arith.addf %144, %145 : vector<8x128xf32>
    %147 = arith.mulf %146, %139 : vector<8x128xf32>
    %cst_66 = arith.constant -0.284496725 : f32
    %148 = vector.broadcast %cst_66 : f32 to vector<8x128xf32>
    %149 = arith.addf %147, %148 : vector<8x128xf32>
    %150 = arith.mulf %149, %139 : vector<8x128xf32>
    %cst_67 = arith.constant 0.254829586 : f32
    %151 = vector.broadcast %cst_67 : f32 to vector<8x128xf32>
    %152 = arith.addf %150, %151 : vector<8x128xf32>
    %153 = arith.mulf %152, %139 : vector<8x128xf32>
    %cst_68 = arith.constant 0.000000e+00 : f32
    %154 = vector.broadcast %cst_68 : f32 to vector<8x128xf32>
    %155 = arith.subf %154, %133 : vector<8x128xf32>
    %156 = arith.mulf %155, %133 : vector<8x128xf32>
    %157 = math.exp %156 : vector<8x128xf32>
    %158 = arith.mulf %153, %157 : vector<8x128xf32>
    %cst_69 = arith.constant 1.000000e+00 : f32
    %159 = vector.broadcast %cst_69 : f32 to vector<8x128xf32>
    %160 = arith.subf %159, %158 : vector<8x128xf32>
    %cst_70 = arith.constant 0.000000e+00 : f32
    %161 = vector.broadcast %cst_70 : f32 to vector<8x128xf32>
    %162 = arith.cmpf oge, %132, %161 : vector<8x128xf32>
    %cst_71 = arith.constant 0.000000e+00 : f32
    %163 = vector.broadcast %cst_71 : f32 to vector<8x128xf32>
    %164 = arith.subf %163, %160 : vector<8x128xf32>
    %165 = arith.select %162, %160, %164 : vector<8x128xi1>, vector<8x128xf32>
    %cst_72 = arith.constant 1.000000e+00 : f32
    %166 = vector.broadcast %cst_72 : f32 to vector<8x128xf32>
    %167 = arith.addf %166, %165 : vector<8x128xf32>
    %168 = arith.mulf %130, %167 : vector<8x128xf32>
    %169 = arith.truncf %168 : vector<8x128xf32> to vector<8x128xbf16>
    %c0_73 = arith.constant 0 : index
    %c0_74 = arith.constant 0 : index
    %c0_75 = arith.constant 0 : index
    %170 = vector.load %arg14[%c0_73, %c0_74, %c0_75] : memref<1x128x32xbf16, #tpu.memory_space<vmem>>, vector<1x128x32xbf16>
    %171 = vector.shape_cast %170 : vector<1x128x32xbf16> to vector<128x32xbf16>
    %cst_76 = arith.constant dense<0.000000e+00> : vector<8x32xf32>
    %172 = tpu.matmul %169, %171, %cst_76 {dimension_numbers = #tpu.dot_dimension_numbers<[1], [0], [0], [1], [0, 0, 1, 1], [], []>} : vector<8x128xbf16>, vector<128x32xbf16>, vector<8x32xf32> -> vector<8x32xf32>
    %c0_77 = arith.constant 0 : index
    %c0_78 = arith.constant 0 : index
    %c0_79 = arith.constant 0 : index
    %173 = vector.load %arg15[%c0_77, %c0_78, %c0_79] : memref<1x1x32xf32, #tpu.memory_space<vmem>>, vector<1x1x32xf32>
    %174 = vector.shape_cast %173 : vector<1x1x32xf32> to vector<1x32xf32>
    %175 = vector.broadcast %174 : vector<1x32xf32> to vector<8x32xf32>
    %176 = arith.addf %172, %175 : vector<8x32xf32>
    %177 = arith.addf %94, %176 : vector<8x32xf32>
    %c0_80 = arith.constant 0 : index
    %c0_81 = arith.constant 0 : index
    %c0_82 = arith.constant 0 : index
    %178 = vector.load %arg16[%c0_80, %c0_81, %c0_82] : memref<1x8x32xf32, #tpu.memory_space<vmem>>, vector<1x8x32xf32>
    %179 = vector.shape_cast %178 : vector<1x8x32xf32> to vector<8x32xf32>
    %180 = vector.shape_cast %177 : vector<8x32xf32> to vector<1x8x32xf32>
    tpu.vector_store %arg16[%c0_80, %c0_81, %c0_82], %180 {strides = array<i32>} : memref<1x8x32xf32, #tpu.memory_space<vmem>>, vector<1x8x32xf32>,
    return
  }
  func.func @transform_0(%arg0: i32, %arg1: i32) -> (i32, i32, i32) {
    %c0_i32 = arith.constant 0 : i32
    %c0_i32_0 = arith.constant 0 : i32
    %c0_i32_1 = arith.constant 0 : i32
    return %arg0, %c0_i32, %c0_i32_0 : i32, i32, i32
  }
  func.func @transform_1(%arg0: i32, %arg1: i32) -> (i32, i32, i32) {
    %c0_i32 = arith.constant 0 : i32
    %c0_i32_0 = arith.constant 0 : i32
    %c0_i32_1 = arith.constant 0 : i32
    return %arg0, %c0_i32, %c0_i32_0 : i32, i32, i32
  }
  func.func @transform_2(%arg0: i32, %arg1: i32) -> (i32, i32, i32) {
    %c0_i32 = arith.constant 0 : i32
    %c0_i32_0 = arith.constant 0 : i32
    %c0_i32_1 = arith.constant 0 : i32
    return %arg1, %c0_i32, %c0_i32_0 : i32, i32, i32
  }
  func.func @transform_3(%arg0: i32, %arg1: i32) -> (i32, i32, i32) {
    %c0_i32 = arith.constant 0 : i32
    %c0_i32_0 = arith.constant 0 : i32
    %c0_i32_1 = arith.constant 0 : i32
    return %arg1, %c0_i32, %c0_i32_0 : i32, i32, i32
  }
  func.func @transform_4(%arg0: i32, %arg1: i32) -> (i32, i32, i32) {
    %c0_i32 = arith.constant 0 : i32
    %c0_i32_0 = arith.constant 0 : i32
    %c0_i32_1 = arith.constant 0 : i32
    return %arg1, %c0_i32, %c0_i32_0 : i32, i32, i32
  }
  func.func @transform_5(%arg0: i32, %arg1: i32) -> (i32, i32, i32) {
    %c0_i32 = arith.constant 0 : i32
    %c0_i32_0 = arith.constant 0 : i32
    %c0_i32_1 = arith.constant 0 : i32
    return %arg1, %c0_i32, %c0_i32_0 : i32, i32, i32
  }
  func.func @transform_6(%arg0: i32, %arg1: i32) -> (i32, i32, i32) {
    %c0_i32 = arith.constant 0 : i32
    %c0_i32_0 = arith.constant 0 : i32
    %c0_i32_1 = arith.constant 0 : i32
    return %arg1, %c0_i32, %c0_i32_0 : i32, i32, i32
  }
  func.func @transform_7(%arg0: i32, %arg1: i32) -> (i32, i32, i32) {
    %c0_i32 = arith.constant 0 : i32
    %c0_i32_0 = arith.constant 0 : i32
    %c0_i32_1 = arith.constant 0 : i32
    return %arg1, %c0_i32, %c0_i32_0 : i32, i32, i32
  }
  func.func @transform_8(%arg0: i32, %arg1: i32) -> (i32, i32, i32) {
    %c0_i32 = arith.constant 0 : i32
    %c0_i32_0 = arith.constant 0 : i32
    %c0_i32_1 = arith.constant 0 : i32
    return %arg1, %c0_i32, %c0_i32_0 : i32, i32, i32
  }
  func.func @transform_9(%arg0: i32, %arg1: i32) -> (i32, i32, i32) {
    %c0_i32 = arith.constant 0 : i32
    %c0_i32_0 = arith.constant 0 : i32
    %c0_i32_1 = arith.constant 0 : i32
    return %arg1, %c0_i32, %c0_i32_0 : i32, i32, i32
  }
  func.func @transform_10(%arg0: i32, %arg1: i32) -> (i32, i32, i32) {
    %c0_i32 = arith.constant 0 : i32
    %c0_i32_0 = arith.constant 0 : i32
    %c0_i32_1 = arith.constant 0 : i32
    return %arg1, %c0_i32, %c0_i32_0 : i32, i32, i32
  }
  func.func @transform_11(%arg0: i32, %arg1: i32) -> (i32, i32, i32) {
    %c0_i32 = arith.constant 0 : i32
    %c0_i32_0 = arith.constant 0 : i32
    %c0_i32_1 = arith.constant 0 : i32
    return %arg1, %c0_i32, %c0_i32_0 : i32, i32, i32
  }
  func.func @transform_12(%arg0: i32, %arg1: i32) -> (i32, i32, i32) {
    %c0_i32 = arith.constant 0 : i32
    %c0_i32_0 = arith.constant 0 : i32
    %c0_i32_1 = arith.constant 0 : i32
    return %arg1, %c0_i32, %c0_i32_0 : i32, i32, i32
  }
  func.func @transform_13(%arg0: i32, %arg1: i32) -> (i32, i32, i32) {
    %c0_i32 = arith.constant 0 : i32
    %c0_i32_0 = arith.constant 0 : i32
    %c0_i32_1 = arith.constant 0 : i32
    return %arg1, %c0_i32, %c0_i32_0 : i32, i32, i32
  }
  func.func @transform_14(%arg0: i32, %arg1: i32) -> (i32, i32, i32) {
    %c0_i32 = arith.constant 0 : i32
    %c0_i32_0 = arith.constant 0 : i32
    %c0_i32_1 = arith.constant 0 : i32
    return %arg0, %c0_i32, %c0_i32_0 : i32, i32, i32
  }
}

</mosaic_0001>

<llo_original>
// kernel: gpt2_forward.3
$region0: #{gpt2_forward.3}
  #allocation0 [shape = 'u32[]', space=smem, size = 0x4, offset = 0x4, fixed_abs, tag = 'smem constant byte address 0x4 - core index']
  #allocation1 [shape = 'u32[144,128]{1,0:T(1,128)}', space=vmem, size = 0x12000, scoped, tag = 'internal scratch']
  %s0 = inlined_call_operand.vmem [shape: f32[16,32], index: 0, kind: input, shape index: {}]
  %s1 = inlined_call_operand.vmem [shape: f32[1,32], index: 1, kind: input, shape index: {}]
  %s2 = inlined_call_operand.vmem [shape: f32[1,32], index: 2, kind: input, shape index: {}]
  %s3 = inlined_call_operand.vmem [shape: bf16[32,64], index: 3, kind: input, shape index: {}]
  %s4 = inlined_call_operand.hbm [shape: f32[16,64], index: 4, kind: output, shape index: {}]
  %s5 = sld [smem:[#allocation0]]
  $region26: #{gpt2_forward.3} parent=0
    _
  %s7 = ssub.s32 1, %s5
  %s8 = scalar_select 0, %s7, %s5
  $region1: #{gpt2_forward.3} parent=0
    #allocation2 [shape = 'u8[8192]{0}', space=vmem, size = 0x2000, scoped, tag = 'output window, operand 0, single buffered']
    #allocation3 [shape = 's32[1]{0}', space=sflag, size = 0x4, scoped, tag = 'scoped memory for gpt2_forward.3']
    %9 = vsyncpa [#allocation3], 0
    // Predicated region
    $region2: #{gpt2_forward.3} parent=1 // pred_check
      _
    $region3: #{gpt2_forward.3} parent=1 // pred_check_branch
      %11 = sbr.rel (0) target = $region5
    $region4: #{gpt2_forward.3} parent=1 // pred_region
      _
    $region5: #{gpt2_forward.3} parent=1 // pred_fallthru
      _
    // Predicated region
    $region6: #{gpt2_forward.3} parent=1 // pred_check
      _
    $region7: #{gpt2_forward.3} parent=1 // pred_check_branch
      %13 = sbr.rel (0) target = $region9
    $region8: #{gpt2_forward.3} parent=1 // pred_region
      _
    $region9: #{gpt2_forward.3} parent=1 // pred_fallthru
      _
    // Predicated region
    $region10: #{gpt2_forward.3} parent=1 // pred_check
      _
    $region11: #{gpt2_forward.3} parent=1 // pred_check_branch
      %15 = sbr.rel (0) target = $region13
    $region12: #{gpt2_forward.3} parent=1 // pred_region
      _
    $region13: #{gpt2_forward.3} parent=1 // pred_fallthru
      _
    // Predicated region
    $region14: #{gpt2_forward.3} parent=1 // pred_check
      _
    $region15: #{gpt2_forward.3} parent=1 // pred_check_branch
      %17 = sbr.rel (0) target = $region17
    $region16: #{gpt2_forward.3} parent=1 // pred_region
      _
    $region17: #{gpt2_forward.3} parent=1 // pred_fallthru
      _
    %v19 = vld [vmem:[%s0] sm:$0xff]
    %v20 = vld [vmem:[%s0 + $0x8] sm:$0xff]
    %v21 = vld [vmem:[%s1] sm:$0x1]
    %v22 = vld [vmem:[%s2] sm:$0x1]
    %vm23 = vcmask 261120
    %v24 = vsel %vm23, %v19, 0.0
    %25 = vadd.xlane.f32.xlu0 %v24
    %v26 = vpop.xlane.xlu0 %25
    %v27 = vsel %vm23, %v20, 0.0
    %28 = vadd.xlane.f32.xlu0 %v27
    %v29 = vpop.xlane.xlu0 %28
    %v30 = vrcp.pop 32.0
    %v31 = vmul.f32 %v26, %v30
    %v32 = vmul.f32 %v29, %v30
    %v33 = vsub.f32 %v19, %v31
    %v34 = vsub.f32 %v20, %v32
    %v35 = vmul.f32 %v33, %v33
    %v36 = vmul.f32 %v34, %v34
    %v37 = vsel %vm23, %v35, 0.0
    %38 = vadd.xlane.f32.xlu0 %v37
    %v39 = vpop.xlane.xlu0 %38
    %v40 = vsel %vm23, %v36, 0.0
    %41 = vadd.xlane.f32.xlu0 %v40
    %v42 = vpop.xlane.xlu0 %41
    %v43 = vmul.f32 %v39, %v30
    %v44 = vmul.f32 %v42, %v30
    %v45 = vadd.f32 %v43, 1e-05
    %v46 = vadd.f32 %v44, 1e-05
    %v47 = vrsqrt.pop %v45
    %v48 = vrsqrt.pop %v46
    %v49 = vmul.f32 %v33, %v47
    %v50 = vmul.f32 %v34, %v48
    %v52 = vlaneseq
    %v53 = vshrl.u32 %v52, 7
    %v54 = vsub.s32 0, %v53
    %v55 = vrot.slane %v21, %v54
    %v57 = vmul.f32 %v49, %v55
    %v58 = vmul.f32 %v50, %v55
    %v60 = vlaneseq
    %v61 = vshrl.u32 %v60, 7
    %v62 = vsub.s32 0, %v61
    %v63 = vrot.slane %v22, %v62
    %v65 = vadd.f32 %v57, %v63
    %v66 = vadd.f32 %v58, %v63
    %v67 = vpack.c.bf16 %v66, %v65
    %v68 = vld [vmem:[%s3] sm:$0xf]
    %v69 = vld [vmem:[%s3 + $0x4] sm:$0xf]
    %v70 = vld [vmem:[%s3 + $0x8] sm:$0xf]
    %v71 = vld [vmem:[%s3 + $0xc] sm:$0xf]
    %v76 = vunpack.c.l.b16 %v68
    %v77 = vunpack.c.l.b16 %v69
    %v78 = vunpack.c.l.b16 %v70
    %v79 = vunpack.c.l.b16 %v71
    %v80 = vpack.c.b16 %v77, %v76
    %v81 = vpack.c.b16 %v79, %v78
    %v85 = vsel %vm23, %v67, 0
    %87 = vmatprep.subr.bf16.mxu0 0
    %88 = vmatpush1.bf16.msra.mxu0 %v80
    %89 = vmatprep.subr.bf16.mxu0 0
    %90 = vmatpush1.bf16.msra.mxu0 %v81
    %91 = vmatprep.subr.bf16.mxu0 0
    %92 = vmatpush1.bf16.msra.mxu0 0
    %93 = vmatprep.subr.bf16.mxu0 0
    %94 = vmatpush1.bf16.msra.mxu0 0
    %95 = vmatprep.subr.bf16.mxu0 0
    %96 = vmatpush1.bf16.msra.mxu0 0
    %97 = vmatprep.subr.bf16.mxu0 0
    %98 = vmatpush1.bf16.msra.mxu0 0
    %99 = vmatprep.subr.bf16.mxu0 0
    %100 = vmatpush1.bf16.msra.mxu0 0
    %101 = vmatprep.subr.bf16.mxu0 0
    %102 = vmatpush1.bf16.msra.mxu0 0
    %103 = vmatprep.subr.bf16.mxu0 0
    %104 = vmatpush1.bf16.msra.mxu0 0
    %105 = vmatprep.subr.bf16.mxu0 0
    %106 = vmatpush1.bf16.msra.mxu0 0
    %107 = vmatprep.subr.bf16.mxu0 0
    %108 = vmatpush1.bf16.msra.mxu0 0
    %109 = vmatprep.subr.bf16.mxu0 0
    %110 = vmatpush1.bf16.msra.mxu0 0
    %111 = vmatprep.subr.bf16.mxu0 0
    %112 = vmatpush1.bf16.msra.mxu0 0
    %113 = vmatprep.subr.bf16.mxu0 0
    %114 = vmatpush1.bf16.msra.mxu0 0
    %115 = vmatprep.subr.bf16.mxu0 0
    %116 = vmatpush1.bf16.msra.mxu0 0
    %117 = vmatprep.subr.bf16.mxu0 0
    %118 = vmatpush1.bf16.msra.mxu0 0
    %119 = vmatprep.mubr.bf16.mxu0 0
    %120 = vmatmul.mubr.bf16.gmra.mrb[0].mxu0 %v85
    %v121 = vpop.f32.mrb[0].mxu0
    %v122 = vadd.f32 0.0, %v121
    %v123 = vpop.f32.mrb[0].mxu0
    %v124 = vpop.f32.mrb[0].mxu0
    %v125 = vadd.f32 0.0, %v124
    %v126 = vpop.f32.mrb[0].mxu0
    %127 = vdwg.mxu0
    %vm128 = vcmask 523264
    %129 = vst.msk [vmem:[#allocation2] sm:$0xff] %vm128, %v122
    %130 = vst.msk [vmem:[#allocation2 + $0x8] sm:$0xff] %vm128, %v125
    // Predicated region
    $region18: #{gpt2_forward.3} parent=1 // pred_check
      _
    $region19: #{gpt2_forward.3} parent=1 // pred_check_branch
      %132 = sbr.rel (0) target = $region21
    $region20: #{gpt2_forward.3} parent=1 // pred_region
      %s134 = ssub.s32 256, 256
      %135 = vsyncadd [#allocation3], %s134
      %s136 = sshll.u32 [#allocation2], 4
      %s137 = int_to_ptr.vmem [resolvable:$true] %s136
      %142 = dma.vmem_to_hbm [thread:$0]  %s137, 256, %s4, [#allocation3], 128, 128, 8
    $region21: #{gpt2_forward.3} parent=1 // pred_fallthru
      _
    // Predicated region
    $region22: #{gpt2_forward.3} parent=1 // pred_check
      _
    $region23: #{gpt2_forward.3} parent=1 // pred_check_branch
      %144 = sbr.rel (0) target = $region25
    $region24: #{gpt2_forward.3} parent=1 // pred_region
      %145 = dma.done [#allocation3], 256
    $region25: #{gpt2_forward.3} parent=1 // pred_fallthru
      _
    %146 = vsyncpa [#allocation3], 1

// kernel: gpt2_forward.2
$region0: #{gpt2_forward.2}
  #allocation0 [shape = 'u32[]', space=smem, size = 0x4, offset = 0x4, fixed_abs, tag = 'smem constant byte address 0x4 - core index']
  #allocation1 [shape = 'u32[144,128]{1,0:T(1,128)}', space=vmem, size = 0x12000, scoped, tag = 'internal scratch']
  %s0 = inlined_call_operand.vmem [shape: f32[2,8,32], index: 0, kind: input, shape index: {}]
  %s1 = inlined_call_operand.vmem [shape: f32[2,1,8], index: 1, kind: input, shape index: {}]
  %s2 = inlined_call_operand.vmem [shape: f32[2,1,32], index: 2, kind: input, shape index: {}]
  %s3 = inlined_call_operand.vmem [shape: f32[2,1,32], index: 3, kind: input, shape index: {}]
  %s4 = inlined_call_operand.vmem [shape: bf16[2,32,192], index: 4, kind: input, shape index: {}]
  %s5 = inlined_call_operand.vmem [shape: f32[2,1,192], index: 5, kind: input, shape index: {}]
  %s6 = inlined_call_operand.vmem [shape: bf16[2,64,32], index: 6, kind: input, shape index: {}]
  %s7 = inlined_call_operand.vmem [shape: f32[2,1,32], index: 7, kind: input, shape index: {}]
  %s8 = inlined_call_operand.vmem [shape: f32[2,1,32], index: 8, kind: input, shape index: {}]
  %s9 = inlined_call_operand.vmem [shape: f32[2,1,32], index: 9, kind: input, shape index: {}]
  %s10 = inlined_call_operand.vmem [shape: bf16[2,32,128], index: 10, kind: input, shape index: {}]
  %s11 = inlined_call_operand.vmem [shape: f32[2,1,128], index: 11, kind: input, shape index: {}]
  %s12 = inlined_call_operand.vmem [shape: bf16[2,128,32], index: 12, kind: input, shape index: {}]
  %s13 = inlined_call_operand.vmem [shape: f32[2,1,32], index: 13, kind: input, shape index: {}]
  %s14 = inlined_call_operand.vmem [shape: f32[2,8,32], index: 14, kind: output, shape index: {}]
  %s15 = sld [smem:[#allocation0]]
  $region93: #{gpt2_forward.2} parent=0
    _
  %s17 = ssub.s32 1, %s15
  %s18 = scalar_select 0, %s17, %s15
  loop: start=0, step=1, limit=6
  $region2: #{gpt2_forward.2} parent=0 // loop_pre_header
    _
  $region3: #{gpt2_forward.2} parent=0 // loop_header
    %s20 = sphi 0, %s24
    %p21 = scmp.ge.s32.totalorder %s20, 6
    %s27 = sphi 0, %s39
    %s28 = sphi 0, %s35
    %s29 = sphi 0, %s27
    %s30 = sphi 0, %s28
    %s31 = sphi 0, %s29
    %s32 = sphi 0, %s30
    %s42 = sphi 0, %s44
    %s45 = sphi 0, %s42
    %s46 = sphi 0, %s45
    %s62 = sphi 0, %s46
    %s68 = sphi 0, %s70
    %s71 = sphi 0, %s68
    %s72 = sphi 0, %s71
    %s88 = sphi 0, %s72
    %s94 = sphi 0, %s96
    %s97 = sphi 0, %s94
    %s98 = sphi 0, %s97
    %s114 = sphi 0, %s98
    %s120 = sphi 0, %s122
    %s123 = sphi 0, %s120
    %s124 = sphi 0, %s123
    %s140 = sphi 0, %s124
    %s146 = sphi 0, %s148
    %s149 = sphi 0, %s146
    %s150 = sphi 0, %s149
    %s166 = sphi 0, %s150
    %s172 = sphi 0, %s174
    %s175 = sphi 0, %s172
    %s176 = sphi 0, %s175
    %s192 = sphi 0, %s176
    %s198 = sphi 0, %s200
    %s201 = sphi 0, %s198
    %s202 = sphi 0, %s201
    %s218 = sphi 0, %s202
    %s224 = sphi 0, %s226
    %s227 = sphi 0, %s224
    %s228 = sphi 0, %s227
    %s244 = sphi 0, %s228
    %s250 = sphi 0, %s252
    %s253 = sphi 0, %s250
    %s254 = sphi 0, %s253
    %s270 = sphi 0, %s254
    %s276 = sphi 0, %s278
    %s279 = sphi 0, %s276
    %s280 = sphi 0, %s279
    %s296 = sphi 0, %s280
    %s302 = sphi 0, %s304
    %s305 = sphi 0, %s302
    %s306 = sphi 0, %s305
    %s322 = sphi 0, %s306
    %s328 = sphi 0, %s330
    %s331 = sphi 0, %s328
    %s332 = sphi 0, %s331
    %s348 = sphi 0, %s332
    %s354 = sphi 0, %s356
    %s357 = sphi 0, %s354
    %s358 = sphi 0, %s357
    %s374 = sphi 0, %s358
    %s380 = sphi 0, %s382
    %s383 = sphi 0, %s380
    %s384 = sphi 0, %s383
    %s400 = sphi 0, %s384
    %s406 = sphi 0, %s408
    %s409 = sphi 0, %s406
    %s410 = sphi 0, %s409
    %s426 = sphi 0, %s410
  $region4: #{gpt2_forward.2} parent=0 // loop_header_branch
    %23 = sbr.rel (%p21) target = $region8
  $region5: #{gpt2_forward.2} parent=0 // loop_body
    %s25 = ssub.s32 %s20, 1
    %s26 = ssub.s32 %s20, 2
    %s33 = sadd.s32 1, %s28
    %p34 = scmp.ge.s32.totalorder %s33, 2
    %s35 = scalar_select %p34, 0, %s33
    %s36 = sadd.s32 1, %s27
    %s37 = scalar_select %p34, %s36, %s27
    %p38 = scmp.ge.s32.totalorder %s37, 2
    %s39 = scalar_select %p38, 0, %s37
    %s40 = ssub.s32 %s27, %s39
    %p41 = scmp.eq.s32.totalorder %s40, 0
    %s43 = sadd.s32 %s42, 1
    %s44 = scalar_select %p41, %s42, %s43
    %p47 = pneg %p41
    %p48 = scmp.eq.s32.totalorder %s20, 3
    %p49 = por %p47, %p48
    %p50 = scmp.ne.s32.totalorder %s42, %s45
    %p51 = scmp.eq.s32.totalorder %s20, 0
    %p52 = por %p50, %p51
    %p53 = scmp.ne.s32.totalorder %s42, %s45
    %p54 = scmp.eq.s32.totalorder %s25, 3
    %p55 = por %p53, %p54
    %p56 = scmp.ne.s32.totalorder %s45, %s46
    %p57 = scmp.eq.s32.totalorder %s25, 0
    %p58 = por %p56, %p57
    %p59 = scmp.ne.s32.totalorder %s45, %s46
    %p60 = scmp.eq.s32.totalorder %s26, 3
    %p61 = por %p59, %p60
    %p63 = scmp.ne.s32.totalorder %s46, %s62
    %p64 = scmp.eq.s32.totalorder %s26, 0
    %p65 = por %p63, %p64
    %s66 = ssub.s32 %s27, %s39
    %p67 = scmp.eq.s32.totalorder %s66, 0
    %s69 = sadd.s32 %s68, 1
    %s70 = scalar_select %p67, %s68, %s69
    %p73 = pneg %p67
    %p74 = scmp.eq.s32.totalorder %s20, 3
    %p75 = por %p73, %p74
    %p76 = scmp.ne.s32.totalorder %s68, %s71
    %p77 = scmp.eq.s32.totalorder %s20, 0
    %p78 = por %p76, %p77
    %p79 = scmp.ne.s32.totalorder %s68, %s71
    %p80 = scmp.eq.s32.totalorder %s25, 3
    %p81 = por %p79, %p80
    %p82 = scmp.ne.s32.totalorder %s71, %s72
    %p83 = scmp.eq.s32.totalorder %s25, 0
    %p84 = por %p82, %p83
    %p85 = scmp.ne.s32.totalorder %s71, %s72
    %p86 = scmp.eq.s32.totalorder %s26, 3
    %p87 = por %p85, %p86
    %p89 = scmp.ne.s32.totalorder %s72, %s88
    %p90 = scmp.eq.s32.totalorder %s26, 0
    %p91 = por %p89, %p90
    %s92 = ssub.s32 %s28, %s35
    %p93 = scmp.eq.s32.totalorder %s92, 0
    %s95 = sadd.s32 %s94, 1
    %s96 = scalar_select %p93, %s94, %s95
    %p99 = pneg %p93
    %p100 = scmp.eq.s32.totalorder %s20, 3
    %p101 = por %p99, %p100
    %p102 = scmp.ne.s32.totalorder %s94, %s97
    %p103 = scmp.eq.s32.totalorder %s20, 0
    %p104 = por %p102, %p103
    %p105 = scmp.ne.s32.totalorder %s94, %s97
    %p106 = scmp.eq.s32.totalorder %s25, 3
    %p107 = por %p105, %p106
    %p108 = scmp.ne.s32.totalorder %s97, %s98
    %p109 = scmp.eq.s32.totalorder %s25, 0
    %p110 = por %p108, %p109
    %p111 = scmp.ne.s32.totalorder %s97, %s98
    %p112 = scmp.eq.s32.totalorder %s26, 3
    %p113 = por %p111, %p112
    %p115 = scmp.ne.s32.totalorder %s98, %s114
    %p116 = scmp.eq.s32.totalorder %s26, 0
    %p117 = por %p115, %p116
    %s118 = ssub.s32 %s28, %s35
    %p119 = scmp.eq.s32.totalorder %s118, 0
    %s121 = sadd.s32 %s120, 1
    %s122 = scalar_select %p119, %s120, %s121
    %p125 = pneg %p119
    %p126 = scmp.eq.s32.totalorder %s20, 3
    %p127 = por %p125, %p126
    %p128 = scmp.ne.s32.totalorder %s120, %s123
    %p129 = scmp.eq.s32.totalorder %s20, 0
    %p130 = por %p128, %p129
    %p131 = scmp.ne.s32.totalorder %s120, %s123
    %p132 = scmp.eq.s32.totalorder %s25, 3
    %p133 = por %p131, %p132
    %p134 = scmp.ne.s32.totalorder %s123, %s124
    %p135 = scmp.eq.s32.totalorder %s25, 0
    %p136 = por %p134, %p135
    %p137 = scmp.ne.s32.totalorder %s123, %s124
    %p138 = scmp.eq.s32.totalorder %s26, 3
    %p139 = por %p137, %p138
    %p141 = scmp.ne.s32.totalorder %s124, %s140
    %p142 = scmp.eq.s32.totalorder %s26, 0
    %p143 = por %p141, %p142
    %s144 = ssub.s32 %s28, %s35
    %p145 = scmp.eq.s32.totalorder %s144, 0
    %s147 = sadd.s32 %s146, 1
    %s148 = scalar_select %p145, %s146, %s147
    %p151 = pneg %p145
    %p152 = scmp.eq.s32.totalorder %s20, 3
    %p153 = por %p151, %p152
    %p154 = scmp.ne.s32.totalorder %s146, %s149
    %p155 = scmp.eq.s32.totalorder %s20, 0
    %p156 = por %p154, %p155
    %p157 = scmp.ne.s32.totalorder %s146, %s149
    %p158 = scmp.eq.s32.totalorder %s25, 3
    %p159 = por %p157, %p158
    %p160 = scmp.ne.s32.totalorder %s149, %s150
    %p161 = scmp.eq.s32.totalorder %s25, 0
    %p162 = por %p160, %p161
    %p163 = scmp.ne.s32.totalorder %s149, %s150
    %p164 = scmp.eq.s32.totalorder %s26, 3
    %p165 = por %p163, %p164
    %p167 = scmp.ne.s32.totalorder %s150, %s166
    %p168 = scmp.eq.s32.totalorder %s26, 0
    %p169 = por %p167, %p168
    %s170 = ssub.s32 %s28, %s35
    %p171 = scmp.eq.s32.totalorder %s170, 0
    %s173 = sadd.s32 %s172, 1
    %s174 = scalar_select %p171, %s172, %s173
    %p177 = pneg %p171
    %p178 = scmp.eq.s32.totalorder %s20, 3
    %p179 = por %p177, %p178
    %p180 = scmp.ne.s32.totalorder %s172, %s175
    %p181 = scmp.eq.s32.totalorder %s20, 0
    %p182 = por %p180, %p181
    %p183 = scmp.ne.s32.totalorder %s172, %s175
    %p184 = scmp.eq.s32.totalorder %s25, 3
    %p185 = por %p183, %p184
    %p186 = scmp.ne.s32.totalorder %s175, %s176
    %p187 = scmp.eq.s32.totalorder %s25, 0
    %p188 = por %p186, %p187
    %p189 = scmp.ne.s32.totalorder %s175, %s176
    %p190 = scmp.eq.s32.totalorder %s26, 3
    %p191 = por %p189, %p190
    %p193 = scmp.ne.s32.totalorder %s176, %s192
    %p194 = scmp.eq.s32.totalorder %s26, 0
    %p195 = por %p193, %p194
    %s196 = ssub.s32 %s28, %s35
    %p197 = scmp.eq.s32.totalorder %s196, 0
    %s199 = sadd.s32 %s198, 1
    %s200 = scalar_select %p197, %s198, %s199
    %p203 = pneg %p197
    %p204 = scmp.eq.s32.totalorder %s20, 3
    %p205 = por %p203, %p204
    %p206 = scmp.ne.s32.totalorder %s198, %s201
    %p207 = scmp.eq.s32.totalorder %s20, 0
    %p208 = por %p206, %p207
    %p209 = scmp.ne.s32.totalorder %s198, %s201
    %p210 = scmp.eq.s32.totalorder %s25, 3
    %p211 = por %p209, %p210
    %p212 = scmp.ne.s32.totalorder %s201, %s202
    %p213 = scmp.eq.s32.totalorder %s25, 0
    %p214 = por %p212, %p213
    %p215 = scmp.ne.s32.totalorder %s201, %s202
    %p216 = scmp.eq.s32.totalorder %s26, 3
    %p217 = por %p215, %p216
    %p219 = scmp.ne.s32.totalorder %s202, %s218
    %p220 = scmp.eq.s32.totalorder %s26, 0
    %p221 = por %p219, %p220
    %s222 = ssub.s32 %s28, %s35
    %p223 = scmp.eq.s32.totalorder %s222, 0
    %s225 = sadd.s32 %s224, 1
    %s226 = scalar_select %p223, %s224, %s225
    %p229 = pneg %p223
    %p230 = scmp.eq.s32.totalorder %s20, 3
    %p231 = por %p229, %p230
    %p232 = scmp.ne.s32.totalorder %s224, %s227
    %p233 = scmp.eq.s32.totalorder %s20, 0
    %p234 = por %p232, %p233
    %p235 = scmp.ne.s32.totalorder %s224, %s227
    %p236 = scmp.eq.s32.totalorder %s25, 3
    %p237 = por %p235, %p236
    %p238 = scmp.ne.s32.totalorder %s227, %s228
    %p239 = scmp.eq.s32.totalorder %s25, 0
    %p240 = por %p238, %p239
    %p241 = scmp.ne.s32.totalorder %s227, %s228
    %p242 = scmp.eq.s32.totalorder %s26, 3
    %p243 = por %p241, %p242
    %p245 = scmp.ne.s32.totalorder %s228, %s244
    %p246 = scmp.eq.s32.totalorder %s26, 0
    %p247 = por %p245, %p246
    %s248 = ssub.s32 %s28, %s35
    %p249 = scmp.eq.s32.totalorder %s248, 0
    %s251 = sadd.s32 %s250, 1
    %s252 = scalar_select %p249, %s250, %s251
    %p255 = pneg %p249
    %p256 = scmp.eq.s32.totalorder %s20, 3
    %p257 = por %p255, %p256
    %p258 = scmp.ne.s32.totalorder %s250, %s253
    %p259 = scmp.eq.s32.totalorder %s20, 0
    %p260 = por %p258, %p259
    %p261 = scmp.ne.s32.totalorder %s250, %s253
    %p262 = scmp.eq.s32.totalorder %s25, 3
    %p263 = por %p261, %p262
    %p264 = scmp.ne.s32.totalorder %s253, %s254
    %p265 = scmp.eq.s32.totalorder %s25, 0
    %p266 = por %p264, %p265
    %p267 = scmp.ne.s32.totalorder %s253, %s254
    %p268 = scmp.eq.s32.totalorder %s26, 3
    %p269 = por %p267, %p268
    %p271 = scmp.ne.s32.totalorder %s254, %s270
    %p272 = scmp.eq.s32.totalorder %s26, 0
    %p273 = por %p271, %p272
    %s274 = ssub.s32 %s28, %s35
    %p275 = scmp.eq.s32.totalorder %s274, 0
    %s277 = sadd.s32 %s276, 1
    %s278 = scalar_select %p275, %s276, %s277
    %p281 = pneg %p275
    %p282 = scmp.eq.s32.totalorder %s20, 3
    %p283 = por %p281, %p282
    %p284 = scmp.ne.s32.totalorder %s276, %s279
    %p285 = scmp.eq.s32.totalorder %s20, 0
    %p286 = por %p284, %p285
    %p287 = scmp.ne.s32.totalorder %s276, %s279
    %p288 = scmp.eq.s32.totalorder %s25, 3
    %p289 = por %p287, %p288
    %p290 = scmp.ne.s32.totalorder %s279, %s280
    %p291 = scmp.eq.s32.totalorder %s25, 0
    %p292 = por %p290, %p291
    %p293 = scmp.ne.s32.totalorder %s279, %s280
    %p294 = scmp.eq.s32.totalorder %s26, 3
    %p295 = por %p293, %p294
    %p297 = scmp.ne.s32.totalorder %s280, %s296
    %p298 = scmp.eq.s32.totalorder %s26, 0
    %p299 = por %p297, %p298
    %s300 = ssub.s32 %s28, %s35
    %p301 = scmp.eq.s32.totalorder %s300, 0
    %s303 = sadd.s32 %s302, 1
    %s304 = scalar_select %p301, %s302, %s303
    %p307 = pneg %p301
    %p308 = scmp.eq.s32.totalorder %s20, 3
    %p309 = por %p307, %p308
    %p310 = scmp.ne.s32.totalorder %s302, %s305
    %p311 = scmp.eq.s32.totalorder %s20, 0
    %p312 = por %p310, %p311
    %p313 = scmp.ne.s32.totalorder %s302, %s305
    %p314 = scmp.eq.s32.totalorder %s25, 3
    %p315 = por %p313, %p314
    %p316 = scmp.ne.s32.totalorder %s305, %s306
    %p317 = scmp.eq.s32.totalorder %s25, 0
    %p318 = por %p316, %p317
    %p319 = scmp.ne.s32.totalorder %s305, %s306
    %p320 = scmp.eq.s32.totalorder %s26, 3
    %p321 = por %p319, %p320
    %p323 = scmp.ne.s32.totalorder %s306, %s322
    %p324 = scmp.eq.s32.totalorder %s26, 0
    %p325 = por %p323, %p324
    %s326 = ssub.s32 %s28, %s35
    %p327 = scmp.eq.s32.totalorder %s326, 0
    %s329 = sadd.s32 %s328, 1
    %s330 = scalar_select %p327, %s328, %s329
    %p333 = pneg %p327
    %p334 = scmp.eq.s32.totalorder %s20, 3
    %p335 = por %p333, %p334
    %p336 = scmp.ne.s32.totalorder %s328, %s331
    %p337 = scmp.eq.s32.totalorder %s20, 0
    %p338 = por %p336, %p337
    %p339 = scmp.ne.s32.totalorder %s328, %s331
    %p340 = scmp.eq.s32.totalorder %s25, 3
    %p341 = por %p339, %p340
    %p342 = scmp.ne.s32.totalorder %s331, %s332
    %p343 = scmp.eq.s32.totalorder %s25, 0
    %p344 = por %p342, %p343
    %p345 = scmp.ne.s32.totalorder %s331, %s332
    %p346 = scmp.eq.s32.totalorder %s26, 3
    %p347 = por %p345, %p346
    %p349 = scmp.ne.s32.totalorder %s332, %s348
    %p350 = scmp.eq.s32.totalorder %s26, 0
    %p351 = por %p349, %p350
    %s352 = ssub.s32 %s28, %s35
    %p353 = scmp.eq.s32.totalorder %s352, 0
    %s355 = sadd.s32 %s354, 1
    %s356 = scalar_select %p353, %s354, %s355
    %p359 = pneg %p353
    %p360 = scmp.eq.s32.totalorder %s20, 3
    %p361 = por %p359, %p360
    %p362 = scmp.ne.s32.totalorder %s354, %s357
    %p363 = scmp.eq.s32.totalorder %s20, 0
    %p364 = por %p362, %p363
    %p365 = scmp.ne.s32.totalorder %s354, %s357
    %p366 = scmp.eq.s32.totalorder %s25, 3
    %p367 = por %p365, %p366
    %p368 = scmp.ne.s32.totalorder %s357, %s358
    %p369 = scmp.eq.s32.totalorder %s25, 0
    %p370 = por %p368, %p369
    %p371 = scmp.ne.s32.totalorder %s357, %s358
    %p372 = scmp.eq.s32.totalorder %s26, 3
    %p373 = por %p371, %p372
    %p375 = scmp.ne.s32.totalorder %s358, %s374
    %p376 = scmp.eq.s32.totalorder %s26, 0
    %p377 = por %p375, %p376
    %s378 = ssub.s32 %s28, %s35
    %p379 = scmp.eq.s32.totalorder %s378, 0
    %s381 = sadd.s32 %s380, 1
    %s382 = scalar_select %p379, %s380, %s381
    %p385 = pneg %p379
    %p386 = scmp.eq.s32.totalorder %s20, 3
    %p387 = por %p385, %p386
    %p388 = scmp.ne.s32.totalorder %s380, %s383
    %p389 = scmp.eq.s32.totalorder %s20, 0
    %p390 = por %p388, %p389
    %p391 = scmp.ne.s32.totalorder %s380, %s383
    %p392 = scmp.eq.s32.totalorder %s25, 3
    %p393 = por %p391, %p392
    %p394 = scmp.ne.s32.totalorder %s383, %s384
    %p395 = scmp.eq.s32.totalorder %s25, 0
    %p396 = por %p394, %p395
    %p397 = scmp.ne.s32.totalorder %s383, %s384
    %p398 = scmp.eq.s32.totalorder %s26, 3
    %p399 = por %p397, %p398
    %p401 = scmp.ne.s32.totalorder %s384, %s400
    %p402 = scmp.eq.s32.totalorder %s26, 0
    %p403 = por %p401, %p402
    %s404 = ssub.s32 %s27, %s39
    %p405 = scmp.eq.s32.totalorder %s404, 0
    %s407 = sadd.s32 %s406, 1
    %s408 = scalar_select %p405, %s406, %s407
    %p411 = pneg %p405
    %p412 = scmp.eq.s32.totalorder %s20, 3
    %p413 = por %p411, %p412
    %p414 = scmp.ne.s32.totalorder %s406, %s409
    %p415 = scmp.eq.s32.totalorder %s20, 0
    %p416 = por %p414, %p415
    %p417 = scmp.ne.s32.totalorder %s406, %s409
    %p418 = scmp.eq.s32.totalorder %s25, 3
    %p419 = por %p417, %p418
    %p420 = scmp.ne.s32.totalorder %s409, %s410
    %p421 = scmp.eq.s32.totalorder %s25, 0
    %p422 = por %p420, %p421
    %p423 = scmp.ne.s32.totalorder %s409, %s410
    %p424 = scmp.eq.s32.totalorder %s26, 3
    %p425 = por %p423, %p424
    %p427 = scmp.ne.s32.totalorder %s410, %s426
    %p428 = scmp.eq.s32.totalorder %s26, 0
    %p429 = por %p427, %p428
    %p430 = scmp.le.s32.totalorder 1, %s20
    %p431 = scmp.lt.s32.totalorder %s20, 5
    %p432 = pnand %p430, %p431
    %p433 = pneg %p432
    // Predicated region
    $region9: #{gpt2_forward.2} parent=5 // pred_check
      _
    $region10: #{gpt2_forward.2} parent=5 // pred_check_branch
      %435 = sbr.rel (%p432) target = $region12
    $region11: #{gpt2_forward.2} parent=5 // pred_region
      %s436 = ssub.s32 %s20, 1
    $region12: #{gpt2_forward.2} parent=5 // pred_fallthru
      _
    %p437 = scmp.lt.s32.totalorder %s20, 4
    // Predicated region
    $region13: #{gpt2_forward.2} parent=5 // pred_check
      %p438 = pneg %p437
    $region14: #{gpt2_forward.2} parent=5 // pred_check_branch
      %440 = sbr.rel (%p438) target = $region16
    $region15: #{gpt2_forward.2} parent=5 // pred_region
      // Predicated region
      $region17: #{gpt2_forward.2} parent=15 // pred_check
        %p441 = pneg %p52
      $region18: #{gpt2_forward.2} parent=15 // pred_check_branch
        %443 = sbr.rel (%p441) target = $region20
      $region19: #{gpt2_forward.2} parent=15 // pred_region
        %p444 = scmp.lt.s32.totalorder %s27, 1
        %s445 = scalar_select %p444, %s27, 1
        %s446 = smul.addr %s445, 8
        %s447 = scalar_lea.vmem %s0, %s446
      $region20: #{gpt2_forward.2} parent=15 // pred_fallthru
        _
      // Predicated region
      $region21: #{gpt2_forward.2} parent=15 // pred_check
        %p448 = pneg %p78
      $region22: #{gpt2_forward.2} parent=15 // pred_check_branch
        %450 = sbr.rel (%p448) target = $region24
      $region23: #{gpt2_forward.2} parent=15 // pred_region
        %p451 = scmp.lt.s32.totalorder %s27, 1
        %s452 = scalar_select %p451, %s27, 1
        %s453 = scalar_lea.vmem %s1, %s452
      $region24: #{gpt2_forward.2} parent=15 // pred_fallthru
        _
      // Predicated region
      $region25: #{gpt2_forward.2} parent=15 // pred_check
        %p454 = pneg %p104
      $region26: #{gpt2_forward.2} parent=15 // pred_check_branch
        %456 = sbr.rel (%p454) target = $region28
      $region27: #{gpt2_forward.2} parent=15 // pred_region
        %p457 = scmp.lt.s32.totalorder %s28, 1
        %s458 = scalar_select %p457, %s28, 1
        %s459 = scalar_lea.vmem %s2, %s458
      $region28: #{gpt2_forward.2} parent=15 // pred_fallthru
        _
      // Predicated region
      $region29: #{gpt2_forward.2} parent=15 // pred_check
        %p460 = pneg %p130
      $region30: #{gpt2_forward.2} parent=15 // pred_check_branch
        %462 = sbr.rel (%p460) target = $region32
      $region31: #{gpt2_forward.2} parent=15 // pred_region
        %p463 = scmp.lt.s32.totalorder %s28, 1
        %s464 = scalar_select %p463, %s28, 1
        %s465 = scalar_lea.vmem %s3, %s464
      $region32: #{gpt2_forward.2} parent=15 // pred_fallthru
        _
      // Predicated region
      $region33: #{gpt2_forward.2} parent=15 // pred_check
        %p466 = pneg %p156
      $region34: #{gpt2_forward.2} parent=15 // pred_check_branch
        %468 = sbr.rel (%p466) target = $region36
      $region35: #{gpt2_forward.2} parent=15 // pred_region
        %p469 = scmp.lt.s32.totalorder %s28, 1
        %s470 = scalar_select %p469, %s28, 1
        %s471 = smul.addr %s470, 8
        %s472 = smul.addr %s471, 4
        %s473 = scalar_lea.vmem %s4, %s472
      $region36: #{gpt2_forward.2} parent=15 // pred_fallthru
        _
      // Predicated region
      $region37: #{gpt2_forward.2} parent=15 // pred_check
        %p474 = pneg %p182
      $region38: #{gpt2_forward.2} parent=15 // pred_check_branch
        %476 = sbr.rel (%p474) target = $region40
      $region39: #{gpt2_forward.2} parent=15 // pred_region
        %p477 = scmp.lt.s32.totalorder %s28, 1
        %s478 = scalar_select %p477, %s28, 1
        %s479 = smul.addr %s478, 2
        %s480 = scalar_lea.vmem %s5, %s479
      $region40: #{gpt2_forward.2} parent=15 // pred_fallthru
        _
      // Predicated region
      $region41: #{gpt2_forward.2} parent=15 // pred_check
        %p481 = pneg %p208
      $region42: #{gpt2_forward.2} parent=15 // pred_check_branch
        %483 = sbr.rel (%p481) target = $region44
      $region43: #{gpt2_forward.2} parent=15 // pred_region
        %p484 = scmp.lt.s32.totalorder %s28, 1
        %s485 = scalar_select %p484, %s28, 1
        %s486 = smul.addr %s485, 8
        %s487 = smul.addr %s486, 4
        %s488 = scalar_lea.vmem %s6, %s487
      $region44: #{gpt2_forward.2} parent=15 // pred_fallthru
        _
      // Predicated region
      $region45: #{gpt2_forward.2} parent=15 // pred_check
        %p489 = pneg %p234
      $region46: #{gpt2_forward.2} parent=15 // pred_check_branch
        %491 = sbr.rel (%p489) target = $region48
      $region47: #{gpt2_forward.2} parent=15 // pred_region
        %p492 = scmp.lt.s32.totalorder %s28, 1
        %s493 = scalar_select %p492, %s28, 1
        %s494 = scalar_lea.vmem %s7, %s493
      $region48: #{gpt2_forward.2} parent=15 // pred_fallthru
        _
      // Predicated region
      $region49: #{gpt2_forward.2} parent=15 // pred_check
        %p495 = pneg %p260
      $region50: #{gpt2_forward.2} parent=15 // pred_check_branch
        %497 = sbr.rel (%p495) target = $region52
      $region51: #{gpt2_forward.2} parent=15 // pred_region
        %p498 = scmp.lt.s32.totalorder %s28, 1
        %s499 = scalar_select %p498, %s28, 1
        %s500 = scalar_lea.vmem %s8, %s499
      $region52: #{gpt2_forward.2} parent=15 // pred_fallthru
        _
      // Predicated region
      $region53: #{gpt2_forward.2} parent=15 // pred_check
        %p501 = pneg %p286
      $region54: #{gpt2_forward.2} parent=15 // pred_check_branch
        %503 = sbr.rel (%p501) target = $region56
      $region55: #{gpt2_forward.2} parent=15 // pred_region
        %p504 = scmp.lt.s32.totalorder %s28, 1
        %s505 = scalar_select %p504, %s28, 1
        %s506 = scalar_lea.vmem %s9, %s505
      $region56: #{gpt2_forward.2} parent=15 // pred_fallthru
        _
      // Predicated region
      $region57: #{gpt2_forward.2} parent=15 // pred_check
        %p507 = pneg %p312
      $region58: #{gpt2_forward.2} parent=15 // pred_check_branch
        %509 = sbr.rel (%p507) target = $region60
      $region59: #{gpt2_forward.2} parent=15 // pred_region
        %p510 = scmp.lt.s32.totalorder %s28, 1
        %s511 = scalar_select %p510, %s28, 1
        %s512 = smul.addr %s511, 4
        %s513 = smul.addr %s512, 4
        %s514 = scalar_lea.vmem %s10, %s513
      $region60: #{gpt2_forward.2} parent=15 // pred_fallthru
        _
      // Predicated region
      $region61: #{gpt2_forward.2} parent=15 // pred_check
        %p515 = pneg %p338
      $region62: #{gpt2_forward.2} parent=15 // pred_check_branch
        %517 = sbr.rel (%p515) target = $region64
      $region63: #{gpt2_forward.2} parent=15 // pred_region
        %p518 = scmp.lt.s32.totalorder %s28, 1
        %s519 = scalar_select %p518, %s28, 1
        %s520 = scalar_lea.vmem %s11, %s519
      $region64: #{gpt2_forward.2} parent=15 // pred_fallthru
        _
      // Predicated region
      $region65: #{gpt2_forward.2} parent=15 // pred_check
        %p521 = pneg %p364
      $region66: #{gpt2_forward.2} parent=15 // pred_check_branch
        %523 = sbr.rel (%p521) target = $region68
      $region67: #{gpt2_forward.2} parent=15 // pred_region
        %p524 = scmp.lt.s32.totalorder %s28, 1
        %s525 = scalar_select %p524, %s28, 1
        %s526 = smul.addr %s525, 16
        %s527 = smul.addr %s526, 4
        %s528 = scalar_lea.vmem %s12, %s527
      $region68: #{gpt2_forward.2} parent=15 // pred_fallthru
        _
      // Predicated region
      $region69: #{gpt2_forward.2} parent=15 // pred_check
        %p529 = pneg %p390
      $region70: #{gpt2_forward.2} parent=15 // pred_check_branch
        %531 = sbr.rel (%p529) target = $region72
      $region71: #{gpt2_forward.2} parent=15 // pred_region
        %p532 = scmp.lt.s32.totalorder %s28, 1
        %s533 = scalar_select %p532, %s28, 1
        %s534 = scalar_lea.vmem %s13, %s533
      $region72: #{gpt2_forward.2} parent=15 // pred_fallthru
        _
    $region16: #{gpt2_forward.2} parent=5 // pred_fallthru
      _
    %p535 = scmp.le.s32.totalorder 1, %s20
    %p536 = scmp.lt.s32.totalorder %s20, 5
    %p537 = pnand %p535, %p536
    %p538 = pneg %p537
    // Predicated region
    $region73: #{gpt2_forward.2} parent=5 // pred_check
      _
    $region74: #{gpt2_forward.2} parent=5 // pred_check_branch
      %540 = sbr.rel (%p537) target = $region76
    $region75: #{gpt2_forward.2} parent=5 // pred_region
      %s541 = ssub.s32 %s20, 1
      %p542 = scmp.lt.s32.totalorder %s29, 1
      %s543 = scalar_select %p542, %s29, 1
      %s544 = smul.addr %s543, 8
      %s545 = scalar_lea.vmem %s0, %s544
      %p546 = pneg %p58
      %p547 = pneg %p55
      %p548 = scmp.lt.s32.totalorder %s29, 1
      %s549 = scalar_select %p548, %s29, 1
      %s550 = scalar_lea.vmem %s1, %s549
      %p551 = pneg %p84
      %p552 = pneg %p81
      %p553 = scmp.lt.s32.totalorder %s30, 1
      %s554 = scalar_select %p553, %s30, 1
      %s555 = scalar_lea.vmem %s2, %s554
      %p556 = pneg %p110
      %p557 = pneg %p107
      %p558 = scmp.lt.s32.totalorder %s30, 1
      %s559 = scalar_select %p558, %s30, 1
      %s560 = scalar_lea.vmem %s3, %s559
      %p561 = pneg %p136
      %p562 = pneg %p133
      %p563 = scmp.lt.s32.totalorder %s30, 1
      %s564 = scalar_select %p563, %s30, 1
      %s565 = smul.addr %s564, 8
      %s566 = smul.addr %s565, 4
      %s567 = scalar_lea.vmem %s4, %s566
      %p568 = pneg %p162
      %p569 = pneg %p159
      %p570 = scmp.lt.s32.totalorder %s30, 1
      %s571 = scalar_select %p570, %s30, 1
      %s572 = smul.addr %s571, 2
      %s573 = scalar_lea.vmem %s5, %s572
      %p574 = pneg %p188
      %p575 = pneg %p185
      %p576 = scmp.lt.s32.totalorder %s30, 1
      %s577 = scalar_select %p576, %s30, 1
      %s578 = smul.addr %s577, 8
      %s579 = smul.addr %s578, 4
      %s580 = scalar_lea.vmem %s6, %s579
      %p581 = pneg %p214
      %p582 = pneg %p211
      %p583 = scmp.lt.s32.totalorder %s30, 1
      %s584 = scalar_select %p583, %s30, 1
      %s585 = scalar_lea.vmem %s7, %s584
      %p586 = pneg %p240
      %p587 = pneg %p237
      %p588 = scmp.lt.s32.totalorder %s30, 1
      %s589 = scalar_select %p588, %s30, 1
      %s590 = scalar_lea.vmem %s8, %s589
      %p591 = pneg %p266
      %p592 = pneg %p263
      %p593 = scmp.lt.s32.totalorder %s30, 1
      %s594 = scalar_select %p593, %s30, 1
      %s595 = scalar_lea.vmem %s9, %s594
      %p596 = pneg %p292
      %p597 = pneg %p289
      %p598 = scmp.lt.s32.totalorder %s30, 1
      %s599 = scalar_select %p598, %s30, 1
      %s600 = smul.addr %s599, 4
      %s601 = smul.addr %s600, 4
      %s602 = scalar_lea.vmem %s10, %s601
      %p603 = pneg %p318
      %p604 = pneg %p315
      %p605 = scmp.lt.s32.totalorder %s30, 1
      %s606 = scalar_select %p605, %s30, 1
      %s607 = scalar_lea.vmem %s11, %s606
      %p608 = pneg %p344
      %p609 = pneg %p341
      %p610 = scmp.lt.s32.totalorder %s30, 1
      %s611 = scalar_select %p610, %s30, 1
      %s612 = smul.addr %s611, 16
      %s613 = smul.addr %s612, 4
      %s614 = scalar_lea.vmem %s12, %s613
      %p615 = pneg %p370
      %p616 = pneg %p367
      %p617 = scmp.lt.s32.totalorder %s30, 1
      %s618 = scalar_select %p617, %s30, 1
      %s619 = scalar_lea.vmem %s13, %s618
      %p620 = pneg %p396
      %p621 = pneg %p393
      %p622 = pneg %p422
      %p623 = pneg %p419
      %p624 = scmp.lt.s32.totalorder %s29, 1
      %s625 = scalar_select %p624, %s29, 1
      %s626 = smul.addr %s625, 8
      %s627 = scalar_lea.vmem %s14, %s626
      %p628 = scmp.lt.s32.totalorder %s29, 1
      %s629 = scalar_select %p628, %s29, 1
      %s630 = smul.addr %s629, 8
      %s631 = scalar_lea.vmem %s0, %s630
      %p632 = scmp.lt.s32.totalorder %s29, 1
      %s633 = scalar_select %p632, %s29, 1
      %s634 = scalar_lea.vmem %s1, %s633
      %p635 = scmp.lt.s32.totalorder %s30, 1
      %s636 = scalar_select %p635, %s30, 1
      %s637 = scalar_lea.vmem %s2, %s636
      %p638 = scmp.lt.s32.totalorder %s30, 1
      %s639 = scalar_select %p638, %s30, 1
      %s640 = scalar_lea.vmem %s3, %s639
      %p641 = scmp.lt.s32.totalorder %s30, 1
      %s642 = scalar_select %p641, %s30, 1
      %s643 = smul.addr %s642, 8
      %s644 = smul.addr %s643, 4
      %s645 = scalar_lea.vmem %s4, %s644
      %p646 = scmp.lt.s32.totalorder %s30, 1
      %s647 = scalar_select %p646, %s30, 1
      %s648 = smul.addr %s647, 2
      %s649 = scalar_lea.vmem %s5, %s648
      %p650 = scmp.lt.s32.totalorder %s30, 1
      %s651 = scalar_select %p650, %s30, 1
      %s652 = smul.addr %s651, 8
      %s653 = smul.addr %s652, 4
      %s654 = scalar_lea.vmem %s6, %s653
      %p655 = scmp.lt.s32.totalorder %s30, 1
      %s656 = scalar_select %p655, %s30, 1
      %s657 = scalar_lea.vmem %s7, %s656
      %p658 = scmp.lt.s32.totalorder %s30, 1
      %s659 = scalar_select %p658, %s30, 1
      %s660 = scalar_lea.vmem %s8, %s659
      %p661 = scmp.lt.s32.totalorder %s30, 1
      %s662 = scalar_select %p661, %s30, 1
      %s663 = scalar_lea.vmem %s9, %s662
      %p664 = scmp.lt.s32.totalorder %s30, 1
      %s665 = scalar_select %p664, %s30, 1
      %s666 = smul.addr %s665, 4
      %s667 = smul.addr %s666, 4
      %s668 = scalar_lea.vmem %s10, %s667
      %p669 = scmp.lt.s32.totalorder %s30, 1
      %s670 = scalar_select %p669, %s30, 1
      %s671 = scalar_lea.vmem %s11, %s670
      %p672 = scmp.lt.s32.totalorder %s30, 1
      %s673 = scalar_select %p672, %s30, 1
      %s674 = smul.addr %s673, 16
      %s675 = smul.addr %s674, 4
      %s676 = scalar_lea.vmem %s12, %s675
      %p677 = scmp.lt.s32.totalorder %s30, 1
      %s678 = scalar_select %p677, %s30, 1
      %s679 = scalar_lea.vmem %s13, %s678
      %p680 = scmp.lt.s32.totalorder %s29, 1
      %s681 = scalar_select %p680, %s29, 1
      %s682 = smul.addr %s681, 8
      %s683 = scalar_lea.vmem %s14, %s682
      %p685 = scmp.eq.s32.totalorder %s30, 0
      // Predicated region
      $region77: #{gpt2_forward.2} parent=75 // pred_check
        %p686 = pneg %p685
      $region78: #{gpt2_forward.2} parent=75 // pred_check_branch
        %688 = sbr.rel (%p686) target = $region80
      $region79: #{gpt2_forward.2} parent=75 // pred_region
        %v689 = vld [vmem:[%s631] sm:$0xff]
        %vm690 = vcmask 261120
        %691 = vst.msk [vmem:[%s683] sm:$0xff] %vm690, %v689
      $region80: #{gpt2_forward.2} parent=75 // pred_fallthru
        _
      %v692 = vld [vmem:[%s683] sm:$0xff]
      %v693 = vld [vmem:[%s634] sm:$0x1]
      %v694 = vld [vmem:[%s637] sm:$0x1]
      %v695 = vld [vmem:[%s640] sm:$0x1]
      %vm696 = vcmask 261120
      %v697 = vsel %vm696, %v692, 0.0
      %698 = vadd.xlane.f32.xlu0 %v697
      %v699 = vpop.xlane.xlu0 %698
      %v700 = vrcp.pop 32.0
      %v701 = vmul.f32 %v699, %v700
      %v702 = vsub.f32 %v692, %v701
      %v703 = vmul.f32 %v702, %v702
      %v704 = vsel %vm696, %v703, 0.0
      %705 = vadd.xlane.f32.xlu0 %v704
      %v706 = vpop.xlane.xlu0 %705
      %v707 = vmul.f32 %v706, %v700
      %v708 = vadd.f32 %v707, 1e-05
      %v709 = vrsqrt.pop %v708
      %v710 = vmul.f32 %v702, %v709
      %v712 = vlaneseq
      %v713 = vshrl.u32 %v712, 7
      %v714 = vsub.s32 0, %v713
      %v715 = vrot.slane %v694, %v714
      %v717 = vmul.f32 %v710, %v715
      %v719 = vlaneseq
      %v720 = vshrl.u32 %v719, 7
      %v721 = vsub.s32 0, %v720
      %v722 = vrot.slane %v695, %v721
      %v724 = vadd.f32 %v717, %v722
      %v725 = vpack.c.bf16 %v724, %v724
      %v726 = vld [vmem:[%s645] sm:$0xff]
      %v727 = vld [vmem:[%s645 + $0x8] sm:$0xff]
      %v728 = vld [vmem:[%s645 + $0x10] sm:$0xff]
      %v729 = vld [vmem:[%s645 + $0x18] sm:$0xff]
      %v730 = vld [vmem:[%s649] sm:$0x3]
      %v732 = vlaneseq
      %v733 = vshrl.u32 %v732, 7
      %v734 = vsub.s32 0, %v733
      %v735 = vrot.slane %v730, %v734
      %v736 = vlaneseq
      %v737 = vshrl.u32 %v736, 7
      %v738 = vsub.s32 1, %v737
      %v739 = vrot.slane %v730, %v738
      %v746 = vunpack.c.l.b16 %v726
      %v747 = vunpack.c.h.b16 %v726
      %v748 = vunpack.c.l.b16 %v727
      %v749 = vunpack.c.h.b16 %v727
      %v750 = vunpack.c.l.b16 %v728
      %v751 = vunpack.c.h.b16 %v728
      %v752 = vunpack.c.l.b16 %v729
      %v753 = vunpack.c.h.b16 %v729
      %v754 = vpack.c.b16 %v748, %v746
      %v755 = vpack.c.b16 %v749, %v747
      %v756 = vpack.c.b16 %v752, %v750
      %v757 = vpack.c.b16 %v753, %v751
      %v763 = vsel %vm696, %v725, 0
      %765 = vmatprep.subr.bf16.mxu0 %v755
      %766 = vmatpush1.bf16.msra.mxu0 %v754
      %767 = vmatprep.subr.bf16.mxu0 %v757
      %768 = vmatpush1.bf16.msra.mxu0 %v756
      %769 = vmatprep.subr.bf16.mxu0 0
      %770 = vmatpush1.bf16.msra.mxu0 0
      %771 = vmatprep.subr.bf16.mxu0 0
      %772 = vmatpush1.bf16.msra.mxu0 0
      %773 = vmatprep.subr.bf16.mxu0 0
      %774 = vmatpush1.bf16.msra.mxu0 0
      %775 = vmatprep.subr.bf16.mxu0 0
      %776 = vmatpush1.bf16.msra.mxu0 0
      %777 = vmatprep.subr.bf16.mxu0 0
      %778 = vmatpush1.bf16.msra.mxu0 0
      %779 = vmatprep.subr.bf16.mxu0 0
      %780 = vmatpush1.bf16.msra.mxu0 0
      %781 = vmatprep.subr.bf16.mxu0 0
      %782 = vmatpush1.bf16.msra.mxu0 0
      %783 = vmatprep.subr.bf16.mxu0 0
      %784 = vmatpush1.bf16.msra.mxu0 0
      %785 = vmatprep.subr.bf16.mxu0 0
      %786 = vmatpush1.bf16.msra.mxu0 0
      %787 = vmatprep.subr.bf16.mxu0 0
      %788 = vmatpush1.bf16.msra.mxu0 0
      %789 = vmatprep.subr.bf16.mxu0 0
      %790 = vmatpush1.bf16.msra.mxu0 0
      %791 = vmatprep.subr.bf16.mxu0 0
      %792 = vmatpush1.bf16.msra.mxu0 0
      %793 = vmatprep.subr.bf16.mxu0 0
      %794 = vmatpush1.bf16.msra.mxu0 0
      %795 = vmatprep.subr.bf16.mxu0 0
      %796 = vmatpush1.bf16.msra.mxu0 0
      %797 = vmatprep.mubr.bf16.mxu0 0
      %798 = vmatmul.mubr.bf16.gmra.mrb[0].mxu0 %v763
      %v799 = vpop.f32.mrb[0].mxu0
      %v800 = vadd.f32 %v735, %v799
      %v801 = vpop.f32.mrb[0].mxu0
      %v802 = vadd.f32 %v739, %v801
      %v803 = vpop.f32.mrb[0].mxu0
      %v804 = vpop.f32.mrb[0].mxu0
      %805 = vdwg.mxu0
      %v806 = vmul.f32 %v800, 0.17677669
      %v807 = vpack.c.bf16 %v806, %v806
      %v808 = vpack.c.bf16 %v800, %v800
      %v810 = vlaneseq
      %v811 = vshrl.u32 %v810, 7
      %v812 = vsub.s32 0, %v811
      %v813 = vrot.slane %v693, %v812
      %816 = vrot.lane.b32.xlu0 %v808, 64
      %v817 = vpop.permute.xlu0 %816
      %v819 = vsel %vm696, %v807, 0
      %v822 = vsel %vm696, %v817, 0
      %824 = vmatprep.subr.bf16.mxu0 0
      %825 = vmatpush1.bf16.xpose.msra.mxu0 %v822
      %826 = vmatprep.subr.bf16.mxu0 0
      %827 = vmatpush1.bf16.xpose.msra.mxu0 0
      %828 = vmatprep.subr.bf16.mxu0 0
      %829 = vmatpush1.bf16.xpose.msra.mxu0 0
      %830 = vmatprep.subr.bf16.mxu0 0
      %831 = vmatpush1.bf16.xpose.msra.mxu0 0
      %832 = vmatprep.subr.bf16.mxu0 0
      %833 = vmatpush1.bf16.xpose.msra.mxu0 0
      %834 = vmatprep.subr.bf16.mxu0 0
      %835 = vmatpush1.bf16.xpose.msra.mxu0 0
      %836 = vmatprep.subr.bf16.mxu0 0
      %837 = vmatpush1.bf16.xpose.msra.mxu0 0
      %838 = vmatprep.subr.bf16.mxu0 0
      %839 = vmatpush1.bf16.xpose.msra.mxu0 0
      %840 = vmatprep.subr.bf16.mxu0 0
      %841 = vmatpush1.bf16.xpose.msra.mxu0 0
      %842 = vmatprep.subr.bf16.mxu0 0
      %843 = vmatpush1.bf16.xpose.msra.mxu0 0
      %844 = vmatprep.subr.bf16.mxu0 0
      %845 = vmatpush1.bf16.xpose.msra.mxu0 0
      %846 = vmatprep.subr.bf16.mxu0 0
      %847 = vmatpush1.bf16.xpose.msra.mxu0 0
      %848 = vmatprep.subr.bf16.mxu0 0
      %849 = vmatpush1.bf16.xpose.msra.mxu0 0
      %850 = vmatprep.subr.bf16.mxu0 0
      %851 = vmatpush1.bf16.xpose.msra.mxu0 0
      %852 = vmatprep.subr.bf16.mxu0 0
      %853 = vmatpush1.bf16.xpose.msra.mxu0 0
      %854 = vmatprep.subr.bf16.mxu0 0
      %855 = vmatpush1.bf16.xpose.msra.mxu0 0
      %856 = vmatprep.mubr.bf16.mxu0 0
      %857 = vmatmul.mubr.bf16.gmra.mrb[0].mxu0 %v819
      %v858 = vpop.f32.mrb[0].mxu0
      %v859 = vadd.f32 %v813, %v858
      %v860 = vpop.f32.mrb[0].mxu0
      %v861 = vpop.f32.mrb[0].mxu0
      %v862 = vpop.f32.mrb[0].mxu0
      %863 = vdwg.mxu0
      %vm864 = vcmask 64512
      %v865 = vsel %vm864, %v859, -inf
      %866 = vmax.xlane.f32.xlu0 %v865
      %v867 = vpop.xlane.xlu0 %866
      %v868 = vsub.f32 %v859, %v867
      %v869 = vmul.f32 %v868, 1.442695
      %v870 = vpow.pop %v869
      %v871 = vsel %vm864, %v870, 0.0
      %872 = vadd.xlane.f32.xlu0 %v871
      %v873 = vpop.xlane.xlu0 %872
      %v874 = vrcp.pop %v873
      %v875 = vmul.f32 %v870, %v874
      %v876 = vpack.c.bf16 %v875, %v875
      %v877 = vpack.c.bf16 %v802, %v802
      %v879 = vsel %vm864, %v876, 0
      %vm881 = vcmask 1043456
      %v883 = vsel %vm881, %v877, 0
      %885 = vmatprep.subr.bf16.mxu0 0
      %886 = vmatpush1.bf16.msra.mxu0 %v883
      %887 = vmatprep.subr.bf16.mxu0 0
      %888 = vmatpush1.bf16.msra.mxu0 0
      %889 = vmatprep.subr.bf16.mxu0 0
      %890 = vmatpush1.bf16.msra.mxu0 0
      %891 = vmatprep.subr.bf16.mxu0 0
      %892 = vmatpush1.bf16.msra.mxu0 0
      %893 = vmatprep.subr.bf16.mxu0 0
      %894 = vmatpush1.bf16.msra.mxu0 0
      %895 = vmatprep.subr.bf16.mxu0 0
      %896 = vmatpush1.bf16.msra.mxu0 0
      %897 = vmatprep.subr.bf16.mxu0 0
      %898 = vmatpush1.bf16.msra.mxu0 0
      %899 = vmatprep.subr.bf16.mxu0 0
      %900 = vmatpush1.bf16.msra.mxu0 0
      %901 = vmatprep.subr.bf16.mxu0 0
      %902 = vmatpush1.bf16.msra.mxu0 0
      %903 = vmatprep.subr.bf16.mxu0 0
      %904 = vmatpush1.bf16.msra.mxu0 0
      %905 = vmatprep.subr.bf16.mxu0 0
      %906 = vmatpush1.bf16.msra.mxu0 0
      %907 = vmatprep.subr.bf16.mxu0 0
      %908 = vmatpush1.bf16.msra.mxu0 0
      %909 = vmatprep.subr.bf16.mxu0 0
      %910 = vmatpush1.bf16.msra.mxu0 0
      %911 = vmatprep.subr.bf16.mxu0 0
      %912 = vmatpush1.bf16.msra.mxu0 0
      %913 = vmatprep.subr.bf16.mxu0 0
      %914 = vmatpush1.bf16.msra.mxu0 0
      %915 = vmatprep.subr.bf16.mxu0 0
      %916 = vmatpush1.bf16.msra.mxu0 0
      %917 = vmatprep.mubr.bf16.mxu0 0
      %918 = vmatmul.mubr.bf16.gmra.mrb[0].mxu0 %v879
      %v919 = vpop.f32.mrb[0].mxu0
      %v920 = vadd.f32 0.0, %v919
      %v921 = vpop.f32.mrb[0].mxu0
      %v922 = vpop.f32.mrb[0].mxu0
      %v923 = vpop.f32.mrb[0].mxu0
      %924 = vdwg.mxu0
      %926 = vrot.lane.b32.xlu0 %v807, 96
      %v927 = vpop.permute.xlu0 %926
      %928 = vrot.lane.b32.xlu0 %v808, 32
      %v929 = vpop.permute.xlu0 %928
      %v931 = vsel %vm696, %v927, 0
      %v934 = vsel %vm696, %v929, 0
      %936 = vmatprep.subr.bf16.mxu0 0
      %937 = vmatpush1.bf16.xpose.msra.mxu0 %v934
      %938 = vmatprep.subr.bf16.mxu0 0
      %939 = vmatpush1.bf16.xpose.msra.mxu0 0
      %940 = vmatprep.subr.bf16.mxu0 0
      %941 = vmatpush1.bf16.xpose.msra.mxu0 0
      %942 = vmatprep.subr.bf16.mxu0 0
      %943 = vmatpush1.bf16.xpose.msra.mxu0 0
      %944 = vmatprep.subr.bf16.mxu0 0
      %945 = vmatpush1.bf16.xpose.msra.mxu0 0
      %946 = vmatprep.subr.bf16.mxu0 0
      %947 = vmatpush1.bf16.xpose.msra.mxu0 0
      %948 = vmatprep.subr.bf16.mxu0 0
      %949 = vmatpush1.bf16.xpose.msra.mxu0 0
      %950 = vmatprep.subr.bf16.mxu0 0
      %951 = vmatpush1.bf16.xpose.msra.mxu0 0
      %952 = vmatprep.subr.bf16.mxu0 0
      %953 = vmatpush1.bf16.xpose.msra.mxu0 0
      %954 = vmatprep.subr.bf16.mxu0 0
      %955 = vmatpush1.bf16.xpose.msra.mxu0 0
      %956 = vmatprep.subr.bf16.mxu0 0
      %957 = vmatpush1.bf16.xpose.msra.mxu0 0
      %958 = vmatprep.subr.bf16.mxu0 0
      %959 = vmatpush1.bf16.xpose.msra.mxu0 0
      %960 = vmatprep.subr.bf16.mxu0 0
      %961 = vmatpush1.bf16.xpose.msra.mxu0 0
      %962 = vmatprep.subr.bf16.mxu0 0
      %963 = vmatpush1.bf16.xpose.msra.mxu0 0
      %964 = vmatprep.subr.bf16.mxu0 0
      %965 = vmatpush1.bf16.xpose.msra.mxu0 0
      %966 = vmatprep.subr.bf16.mxu0 0
      %967 = vmatpush1.bf16.xpose.msra.mxu0 0
      %968 = vmatprep.mubr.bf16.mxu0 0
      %969 = vmatmul.mubr.bf16.gmra.mrb[0].mxu0 %v931
      %v970 = vpop.f32.mrb[0].mxu0
      %v971 = vadd.f32 %v813, %v970
      %v972 = vpop.f32.mrb[0].mxu0
      %v973 = vpop.f32.mrb[0].mxu0
      %v974 = vpop.f32.mrb[0].mxu0
      %975 = vdwg.mxu0
      %v976 = vsel %vm864, %v971, -inf
      %977 = vmax.xlane.f32.xlu0 %v976
      %v978 = vpop.xlane.xlu0 %977
      %v979 = vsub.f32 %v971, %v978
      %v980 = vmul.f32 %v979, 1.442695
      %v981 = vpow.pop %v980
      %v982 = vsel %vm864, %v981, 0.0
      %983 = vadd.xlane.f32.xlu0 %v982
      %v984 = vpop.xlane.xlu0 %983
      %v985 = vrcp.pop %v984
      %v986 = vmul.f32 %v981, %v985
      %v987 = vpack.c.bf16 %v986, %v986
      %989 = vrot.lane.b32.xlu0 %v877, 96
      %v990 = vpop.permute.xlu0 %989
      %v992 = vsel %vm864, %v987, 0
      %v995 = vsel %vm881, %v990, 0
      %997 = vmatprep.subr.bf16.mxu0 0
      %998 = vmatpush1.bf16.msra.mxu0 %v995
      %999 = vmatprep.subr.bf16.mxu0 0
      %1000 = vmatpush1.bf16.msra.mxu0 0
      %1001 = vmatprep.subr.bf16.mxu0 0
      %1002 = vmatpush1.bf16.msra.mxu0 0
      %1003 = vmatprep.subr.bf16.mxu0 0
      %1004 = vmatpush1.bf16.msra.mxu0 0
      %1005 = vmatprep.subr.bf16.mxu0 0
      %1006 = vmatpush1.bf16.msra.mxu0 0
      %1007 = vmatprep.subr.bf16.mxu0 0
      %1008 = vmatpush1.bf16.msra.mxu0 0
      %1009 = vmatprep.subr.bf16.mxu0 0
      %1010 = vmatpush1.bf16.msra.mxu0 0
      %1011 = vmatprep.subr.bf16.mxu0 0
      %1012 = vmatpush1.bf16.msra.mxu0 0
      %1013 = vmatprep.subr.bf16.mxu0 0
      %1014 = vmatpush1.bf16.msra.mxu0 0
      %1015 = vmatprep.subr.bf16.mxu0 0
      %1016 = vmatpush1.bf16.msra.mxu0 0
      %1017 = vmatprep.subr.bf16.mxu0 0
      %1018 = vmatpush1.bf16.msra.mxu0 0
      %1019 = vmatprep.subr.bf16.mxu0 0
      %1020 = vmatpush1.bf16.msra.mxu0 0
      %1021 = vmatprep.subr.bf16.mxu0 0
      %1022 = vmatpush1.bf16.msra.mxu0 0
      %1023 = vmatprep.subr.bf16.mxu0 0
      %1024 = vmatpush1.bf16.msra.mxu0 0
      %1025 = vmatprep.subr.bf16.mxu0 0
      %1026 = vmatpush1.bf16.msra.mxu0 0
      %1027 = vmatprep.subr.bf16.mxu0 0
      %1028 = vmatpush1.bf16.msra.mxu0 0
      %1029 = vmatprep.mubr.bf16.mxu0 0
      %1030 = vmatmul.mubr.bf16.gmra.mrb[0].mxu0 %v992
      %v1031 = vpop.f32.mrb[0].mxu0
      %v1032 = vadd.f32 0.0, %v1031
      %v1033 = vpop.f32.mrb[0].mxu0
      %v1034 = vpop.f32.mrb[0].mxu0
      %v1035 = vpop.f32.mrb[0].mxu0
      %1036 = vdwg.mxu0
      %1038 = vrot.lane.b32.xlu0 %v1032, 32
      %v1039 = vpop.permute.xlu0 %1038
      %v1041 = vsel %vm696, %v920, %v1039
      %v1042 = vpack.c.bf16 %v1041, %v1041
      %v1043 = vld [vmem:[%s654] sm:$0xf]
      %v1044 = vld [vmem:[%s654 + $0x4] sm:$0xf]
      %v1045 = vld [vmem:[%s654 + $0x8] sm:$0xf]
      %v1046 = vld [vmem:[%s654 + $0xc] sm:$0xf]
      %v1047 = vld [vmem:[%s654 + $0x10] sm:$0xf]
      %v1048 = vld [vmem:[%s654 + $0x14] sm:$0xf]
      %v1049 = vld [vmem:[%s654 + $0x18] sm:$0xf]
      %v1050 = vld [vmem:[%s654 + $0x1c] sm:$0xf]
      %v1051 = vld [vmem:[%s657] sm:$0x1]
      %v1053 = vlaneseq
      %v1054 = vshrl.u32 %v1053, 7
      %v1055 = vsub.s32 0, %v1054
      %v1056 = vrot.slane %v1051, %v1055
      %v1066 = vunpack.c.l.b16 %v1043
      %v1067 = vunpack.c.l.b16 %v1044
      %v1068 = vunpack.c.l.b16 %v1045
      %v1069 = vunpack.c.l.b16 %v1046
      %v1070 = vunpack.c.l.b16 %v1047
      %v1071 = vunpack.c.l.b16 %v1048
      %v1072 = vunpack.c.l.b16 %v1049
      %v1073 = vunpack.c.l.b16 %v1050
      %v1074 = vpack.c.b16 %v1067, %v1066
      %v1075 = vpack.c.b16 %v1069, %v1068
      %v1076 = vpack.c.b16 %v1071, %v1070
      %v1077 = vpack.c.b16 %v1073, %v1072
      %vm1082 = vcmask 523264
      %v1084 = vsel %vm1082, %v1042, 0
      %1086 = vmatprep.subr.bf16.mxu0 0
      %1087 = vmatpush1.bf16.msra.mxu0 %v1074
      %1088 = vmatprep.subr.bf16.mxu0 0
      %1089 = vmatpush1.bf16.msra.mxu0 %v1075
      %1090 = vmatprep.subr.bf16.mxu0 0
      %1091 = vmatpush1.bf16.msra.mxu0 %v1076
      %1092 = vmatprep.subr.bf16.mxu0 0
      %1093 = vmatpush1.bf16.msra.mxu0 %v1077
      %1094 = vmatprep.subr.bf16.mxu0 0
      %1095 = vmatpush1.bf16.msra.mxu0 0
      %1096 = vmatprep.subr.bf16.mxu0 0
      %1097 = vmatpush1.bf16.msra.mxu0 0
      %1098 = vmatprep.subr.bf16.mxu0 0
      %1099 = vmatpush1.bf16.msra.mxu0 0
      %1100 = vmatprep.subr.bf16.mxu0 0
      %1101 = vmatpush1.bf16.msra.mxu0 0
      %1102 = vmatprep.subr.bf16.mxu0 0
      %1103 = vmatpush1.bf16.msra.mxu0 0
      %1104 = vmatprep.subr.bf16.mxu0 0
      %1105 = vmatpush1.bf16.msra.mxu0 0
      %1106 = vmatprep.subr.bf16.mxu0 0
      %1107 = vmatpush1.bf16.msra.mxu0 0
      %1108 = vmatprep.subr.bf16.mxu0 0
      %1109 = vmatpush1.bf16.msra.mxu0 0
      %1110 = vmatprep.subr.bf16.mxu0 0
      %1111 = vmatpush1.bf16.msra.mxu0 0
      %1112 = vmatprep.subr.bf16.mxu0 0
      %1113 = vmatpush1.bf16.msra.mxu0 0
      %1114 = vmatprep.subr.bf16.mxu0 0
      %1115 = vmatpush1.bf16.msra.mxu0 0
      %1116 = vmatprep.subr.bf16.mxu0 0
      %1117 = vmatpush1.bf16.msra.mxu0 0
      %1118 = vmatprep.mubr.bf16.mxu0 0
      %1119 = vmatmul.mubr.bf16.gmra.mrb[0].mxu0 %v1084
      %v1120 = vpop.f32.mrb[0].mxu0
      %v1121 = vadd.f32 %v1056, %v1120
      %v1122 = vpop.f32.mrb[0].mxu0
      %v1123 = vpop.f32.mrb[0].mxu0
      %v1124 = vpop.f32.mrb[0].mxu0
      %1125 = vdwg.mxu0
      %v1126 = vadd.f32 %v692, %v1121
      %v1127 = vld [vmem:[%s660] sm:$0x1]
      %v1128 = vld [vmem:[%s663] sm:$0x1]
      %v1129 = vsel %vm696, %v1126, 0.0
      %1130 = vadd.xlane.f32.xlu0 %v1129
      %v1131 = vpop.xlane.xlu0 %1130
      %v1132 = vmul.f32 %v1131, %v700
      %v1133 = vsub.f32 %v1126, %v1132
      %v1134 = vmul.f32 %v1133, %v1133
      %v1135 = vsel %vm696, %v1134, 0.0
      %1136 = vadd.xlane.f32.xlu0 %v1135
      %v1137 = vpop.xlane.xlu0 %1136
      %v1138 = vmul.f32 %v1137, %v700
      %v1139 = vadd.f32 %v1138, 1e-05
      %v1140 = vrsqrt.pop %v1139
      %v1141 = vmul.f32 %v1133, %v1140
      %v1143 = vlaneseq
      %v1144 = vshrl.u32 %v1143, 7
      %v1145 = vsub.s32 0, %v1144
      %v1146 = vrot.slane %v1127, %v1145
      %v1148 = vmul.f32 %v1141, %v1146
      %v1150 = vlaneseq
      %v1151 = vshrl.u32 %v1150, 7
      %v1152 = vsub.s32 0, %v1151
      %v1153 = vrot.slane %v1128, %v1152
      %v1155 = vadd.f32 %v1148, %v1153
      %v1156 = vpack.c.bf16 %v1155, %v1155
      %v1157 = vld [vmem:[%s668] sm:$0xf]
      %v1158 = vld [vmem:[%s668 + $0x4] sm:$0xf]
      %v1159 = vld [vmem:[%s668 + $0x8] sm:$0xf]
      %v1160 = vld [vmem:[%s668 + $0xc] sm:$0xf]
      %v1161 = vld [vmem:[%s671] sm:$0x1]
      %v1163 = vlaneseq
      %v1164 = vshrl.u32 %v1163, 7
      %v1165 = vsub.s32 0, %v1164
      %v1166 = vrot.slane %v1161, %v1165
      %v1172 = vunpack.c.l.b16 %v1157
      %v1173 = vunpack.c.l.b16 %v1158
      %v1174 = vunpack.c.l.b16 %v1159
      %v1175 = vunpack.c.l.b16 %v1160
      %v1176 = vpack.c.b16 %v1173, %v1172
      %v1177 = vpack.c.b16 %v1175, %v1174
      %v1181 = vsel %vm696, %v1156, 0
      %1183 = vmatprep.subr.bf16.mxu0 0
      %1184 = vmatpush1.bf16.msra.mxu0 %v1176
      %1185 = vmatprep.subr.bf16.mxu0 0
      %1186 = vmatpush1.bf16.msra.mxu0 %v1177
      %1187 = vmatprep.subr.bf16.mxu0 0
      %1188 = vmatpush1.bf16.msra.mxu0 0
      %1189 = vmatprep.subr.bf16.mxu0 0
      %1190 = vmatpush1.bf16.msra.mxu0 0
      %1191 = vmatprep.subr.bf16.mxu0 0
      %1192 = vmatpush1.bf16.msra.mxu0 0
      %1193 = vmatprep.subr.bf16.mxu0 0
      %1194 = vmatpush1.bf16.msra.mxu0 0
      %1195 = vmatprep.subr.bf16.mxu0 0
      %1196 = vmatpush1.bf16.msra.mxu0 0
      %1197 = vmatprep.subr.bf16.mxu0 0
      %1198 = vmatpush1.bf16.msra.mxu0 0
      %1199 = vmatprep.subr.bf16.mxu0 0
      %1200 = vmatpush1.bf16.msra.mxu0 0
      %1201 = vmatprep.subr.bf16.mxu0 0
      %1202 = vmatpush1.bf16.msra.mxu0 0
      %1203 = vmatprep.subr.bf16.mxu0 0
      %1204 = vmatpush1.bf16.msra.mxu0 0
      %1205 = vmatprep.subr.bf16.mxu0 0
      %1206 = vmatpush1.bf16.msra.mxu0 0
      %1207 = vmatprep.subr.bf16.mxu0 0
      %1208 = vmatpush1.bf16.msra.mxu0 0
      %1209 = vmatprep.subr.bf16.mxu0 0
      %1210 = vmatpush1.bf16.msra.mxu0 0
      %1211 = vmatprep.subr.bf16.mxu0 0
      %1212 = vmatpush1.bf16.msra.mxu0 0
      %1213 = vmatprep.subr.bf16.mxu0 0
      %1214 = vmatpush1.bf16.msra.mxu0 0
      %1215 = vmatprep.mubr.bf16.mxu0 0
      %1216 = vmatmul.mubr.bf16.gmra.mrb[0].mxu0 %v1181
      %v1217 = vpop.f32.mrb[0].mxu0
      %v1218 = vadd.f32 %v1166, %v1217
      %v1219 = vpop.f32.mrb[0].mxu0
      %v1220 = vpop.f32.mrb[0].mxu0
      %v1221 = vpop.f32.mrb[0].mxu0
      %1222 = vdwg.mxu0
      %v1223 = vmul.f32 %v1218, 0.5
      %v1224 = vmul.f32 %v1218, 0.70710677
      %v1225 = vand.u32 2147483647, %v1224
      %v1226 = vmul.f32 %v1225, 0.3275911
      %v1227 = vadd.f32 %v1226, 1.0
      %v1228 = vrcp.pop %v1227
      %v1229 = vmul.f32 1.0, %v1228
      %v1230 = vmul.f32 %v1229, 1.0614054
      %v1231 = vadd.f32 %v1230, -1.4531521
      %v1232 = vmul.f32 %v1231, %v1229
      %v1233 = vadd.f32 %v1232, 1.4214138
      %v1234 = vmul.f32 %v1233, %v1229
      %v1235 = vadd.f32 %v1234, -0.28449672
      %v1236 = vmul.f32 %v1235, %v1229
      %v1237 = vadd.f32 %v1236, 0.2548296
      %v1238 = vmul.f32 %v1237, %v1229
      %v1239 = vsub.f32 0.0, %v1225
      %v1240 = vmul.f32 %v1239, %v1225
      %v1241 = vmul.f32 %v1240, 1.442695
      %v1242 = vpow.pop %v1241
      %v1243 = vmul.f32 %v1238, %v1242
      %v1244 = vsub.f32 1.0, %v1243
      %vm1245 = vcmp.ge.f32.partialorder %v1224, 0.0
      %v1246 = vsub.f32 0.0, %v1244
      %v1247 = vsel %vm1245, %v1244, %v1246
      %v1248 = vadd.f32 %v1247, 1.0
      %v1249 = vmul.f32 %v1223, %v1248
      %v1250 = vpack.c.bf16 %v1249, %v1249
      %v1251 = vld [vmem:[%s676] sm:$0xf]
      %v1252 = vld [vmem:[%s676 + $0x4] sm:$0xf]
      %v1253 = vld [vmem:[%s676 + $0x8] sm:$0xf]
      %v1254 = vld [vmem:[%s676 + $0xc] sm:$0xf]
      %v1255 = vld [vmem:[%s676 + $0x10] sm:$0xf]
      %v1256 = vld [vmem:[%s676 + $0x14] sm:$0xf]
      %v1257 = vld [vmem:[%s676 + $0x18] sm:$0xf]
      %v1258 = vld [vmem:[%s676 + $0x1c] sm:$0xf]
      %v1259 = vld [vmem:[%s676 + $0x20] sm:$0xf]
      %v1260 = vld [vmem:[%s676 + $0x24] sm:$0xf]
      %v1261 = vld [vmem:[%s676 + $0x28] sm:$0xf]
      %v1262 = vld [vmem:[%s676 + $0x2c] sm:$0xf]
      %v1263 = vld [vmem:[%s676 + $0x30] sm:$0xf]
      %v1264 = vld [vmem:[%s676 + $0x34] sm:$0xf]
      %v1265 = vld [vmem:[%s676 + $0x38] sm:$0xf]
      %v1266 = vld [vmem:[%s676 + $0x3c] sm:$0xf]
      %v1267 = vld [vmem:[%s679] sm:$0x1]
      %v1269 = vlaneseq
      %v1270 = vshrl.u32 %v1269, 7
      %v1271 = vsub.s32 0, %v1270
      %v1272 = vrot.slane %v1267, %v1271
      %v1290 = vunpack.c.l.b16 %v1251
      %v1291 = vunpack.c.l.b16 %v1252
      %v1292 = vunpack.c.l.b16 %v1253
      %v1293 = vunpack.c.l.b16 %v1254
      %v1294 = vunpack.c.l.b16 %v1255
      %v1295 = vunpack.c.l.b16 %v1256
      %v1296 = vunpack.c.l.b16 %v1257
      %v1297 = vunpack.c.l.b16 %v1258
      %v1298 = vunpack.c.l.b16 %v1259
      %v1299 = vunpack.c.l.b16 %v1260
      %v1300 = vunpack.c.l.b16 %v1261
      %v1301 = vunpack.c.l.b16 %v1262
      %v1302 = vunpack.c.l.b16 %v1263
      %v1303 = vunpack.c.l.b16 %v1264
      %v1304 = vunpack.c.l.b16 %v1265
      %v1305 = vunpack.c.l.b16 %v1266
      %v1306 = vpack.c.b16 %v1291, %v1290
      %v1307 = vpack.c.b16 %v1293, %v1292
      %v1308 = vpack.c.b16 %v1295, %v1294
      %v1309 = vpack.c.b16 %v1297, %v1296
      %v1310 = vpack.c.b16 %v1299, %v1298
      %v1311 = vpack.c.b16 %v1301, %v1300
      %v1312 = vpack.c.b16 %v1303, %v1302
      %v1313 = vpack.c.b16 %v1305, %v1304
      %1322 = vmatprep.subr.bf16.mxu0 0
      %1323 = vmatpush1.bf16.msra.mxu0 %v1306
      %1324 = vmatprep.subr.bf16.mxu0 0
      %1325 = vmatpush1.bf16.msra.mxu0 %v1307
      %1326 = vmatprep.subr.bf16.mxu0 0
      %1327 = vmatpush1.bf16.msra.mxu0 %v1308
      %1328 = vmatprep.subr.bf16.mxu0 0
      %1329 = vmatpush1.bf16.msra.mxu0 %v1309
      %1330 = vmatprep.subr.bf16.mxu0 0
      %1331 = vmatpush1.bf16.msra.mxu0 %v1310
      %1332 = vmatprep.subr.bf16.mxu0 0
      %1333 = vmatpush1.bf16.msra.mxu0 %v1311
      %1334 = vmatprep.subr.bf16.mxu0 0
      %1335 = vmatpush1.bf16.msra.mxu0 %v1312
      %1336 = vmatprep.subr.bf16.mxu0 0
      %1337 = vmatpush1.bf16.msra.mxu0 %v1313
      %1338 = vmatprep.subr.bf16.mxu0 0
      %1339 = vmatpush1.bf16.msra.mxu0 0
      %1340 = vmatprep.subr.bf16.mxu0 0
      %1341 = vmatpush1.bf16.msra.mxu0 0
      %1342 = vmatprep.subr.bf16.mxu0 0
      %1343 = vmatpush1.bf16.msra.mxu0 0
      %1344 = vmatprep.subr.bf16.mxu0 0
      %1345 = vmatpush1.bf16.msra.mxu0 0
      %1346 = vmatprep.subr.bf16.mxu0 0
      %1347 = vmatpush1.bf16.msra.mxu0 0
      %1348 = vmatprep.subr.bf16.mxu0 0
      %1349 = vmatpush1.bf16.msra.mxu0 0
      %1350 = vmatprep.subr.bf16.mxu0 0
      %1351 = vmatpush1.bf16.msra.mxu0 0
      %1352 = vmatprep.subr.bf16.mxu0 0
      %1353 = vmatpush1.bf16.msra.mxu0 0
      %1354 = vmatprep.mubr.bf16.mxu0 0
      %1355 = vmatmul.mubr.bf16.gmra.mrb[0].mxu0 %v1250
      %v1356 = vpop.f32.mrb[0].mxu0
      %v1357 = vadd.f32 %v1272, %v1356
      %v1358 = vpop.f32.mrb[0].mxu0
      %v1359 = vpop.f32.mrb[0].mxu0
      %v1360 = vpop.f32.mrb[0].mxu0
      %1361 = vdwg.mxu0
      %v1362 = vadd.f32 %v1126, %v1357
      %1363 = vst.msk [vmem:[%s683] sm:$0xff] %vm696, %v1362
      %p1364 = scmp.lt.s32.totalorder %s29, 1
      %s1365 = scalar_select %p1364, %s29, 1
      %s1366 = smul.addr %s1365, 8
      %s1367 = scalar_lea.vmem %s14, %s1366
      // Predicated region
      $region81: #{gpt2_forward.2} parent=75 // pred_check
        %p1368 = pneg %p419
      $region82: #{gpt2_forward.2} parent=75 // pred_check_branch
        %1370 = sbr.rel (%p1368) target = $region84
      $region83: #{gpt2_forward.2} parent=75 // pred_region
        _
      $region84: #{gpt2_forward.2} parent=75 // pred_fallthru
        _
    $region76: #{gpt2_forward.2} parent=5 // pred_fallthru
      _
    %p1371 = scmp.le.s32.totalorder 2, %s20
    // Predicated region
    $region85: #{gpt2_forward.2} parent=5 // pred_check
      %p1372 = pneg %p1371
    $region86: #{gpt2_forward.2} parent=5 // pred_check_branch
      %1374 = sbr.rel (%p1372) target = $region88
    $region87: #{gpt2_forward.2} parent=5 // pred_region
      %s1375 = ssub.s32 %s20, 2
      // Predicated region
      $region89: #{gpt2_forward.2} parent=87 // pred_check
        %p1376 = pneg %p425
      $region90: #{gpt2_forward.2} parent=87 // pred_check_branch
        %1378 = sbr.rel (%p1376) target = $region92
      $region91: #{gpt2_forward.2} parent=87 // pred_region
        %p1379 = scmp.lt.s32.totalorder %s31, 1
        %s1380 = scalar_select %p1379, %s31, 1
        %s1381 = smul.addr %s1380, 8
        %s1382 = scalar_lea.vmem %s14, %s1381
      $region92: #{gpt2_forward.2} parent=87 // pred_fallthru
        _
    $region88: #{gpt2_forward.2} parent=5 // pred_fallthru
      _
  $region6: #{gpt2_forward.2} parent=0 // loop_footer
    %s24 = sadd.s32 1, %s20
  $region7: #{gpt2_forward.2} parent=0 // loop_footer_branch
    %19 = sbr.rel target = $region3
  $region8: #{gpt2_forward.2} parent=0 // loop_exit
    _

</llo_original>
